<compile_context>
chip_gen: v7x
topology: tpu7x:2x2x1
jax: 0.10.0
libtpu: 0.0.40
codegen_flags: <defaults>
</compile_context>

<pallas_src>
import functools

import numpy as np
import jax
import jax.numpy as jnp
from jax.experimental import pallas as pl
from jax.experimental.pallas import tpu as pltpu


# ----------------------------------------------------------------------------
# helpers
# ----------------------------------------------------------------------------
def _layer_norm_f32(v, g, b, eps=1e-5):
    """torch.nn.LayerNorm over the last axis (biased variance), computed in f32."""
    v = v.astype(jnp.float32)
    mu = jnp.mean(v, axis=-1, keepdims=True)
    var = jnp.mean((v - mu) ** 2, axis=-1, keepdims=True)
    return (v - mu) * jax.lax.rsqrt(var + eps) * g + b


def _round_up(x, m):
    return ((x + m - 1) // m) * m


def _next_pow2(n):
    return 1 if n <= 1 else 1 << (n - 1).bit_length()


def _physical_vmem_bytes():
    """Per-core physical VMEM (128 MiB on v5e/v6e, 64 MiB on v7x)."""
    try:
        return max(int(pltpu.get_tpu_info().vmem_capacity_bytes), 32 << 20)
    except Exception:
        return 64 << 20  # conservative (v7x) fallback


def _pick_tile_l(L, B, d_in, d_h, d_out, kernel_size, halo_blk, cd_bytes, budget):
    """Largest L-tile (power of two, multiple of halo_blk) fitting the budget.

    Accounts for the double-buffered x/mask/output tiles, the halo views, the
    bf16 conv-input scratch, the (double-buffered) weights, and the f32
    compute temporaries produced by LN / PFF / conv inside the kernel body.
    """
    l_cap = _round_up(L, 8)
    hb = halo_blk
    w_bytes = cd_bytes * (d_in * d_h + kernel_size * d_h * d_h + d_h * d_out)
    ln_bytes = 10 * max(d_in, d_h, d_out, 128) * 4

    cands = [t for t in (8, 16, 32, 64, 128, 256, 512, 1024) if t >= hb] or [hb]
    best = cands[0]
    for t in cands:
        if t > max(l_cap, hb):
            break
        need = (
            2 * t * d_in * 4 + 2 * hb * d_in * 4          # x tile + x halo (double-buffered)
            + 2 * t * 128 * 4 + 2 * hb * 128 * 4          # mask views (lane-padded to 128)
            + 2 * t * d_out * 4                           # output tile (double-buffered)
            + (t + hb) * d_h * cd_bytes                   # h_scr conv-input scratch
            + 2 * (w_bytes + ln_bytes)                    # weights, double-buffered
            + (t + hb) * (3 * max(d_in, d_h) + d_in + d_h + d_out) * 4  # f32 temporaries
        )
        if need <= budget:
            best = t
    # Keep >= 2 grid steps when possible so v7x's two TensorCores both get work.
    if B * (-(-L // best)) < 2 and best > max(hb, 8):
        best = max(hb, 8, best // 2)
    return best


# ----------------------------------------------------------------------------
# fused ByteNetBlock kernel
# ----------------------------------------------------------------------------
def _bytenet_block_kernel(
    # inputs (auto-pipelined)
    x_ref, xh_ref, m_ref, mh_ref,
    g1_ref, b1_ref, w1_ref, pb1_ref,
    g2_ref, b2_ref,
    cw_ref, cb_ref,
    g3_ref, b3_ref, w2_ref, pb2_ref,
    # output
    o_ref,
    # scratch
    h_scr,
    *, tile_l, halo, halo_blk, left, kernel_size, dilation, compute_dtype,
):
    f32 = jnp.float32
    cd = compute_dtype

    def sequence1(xv, mv):
        # LN -> ReLU -> PFF -> LN -> ReLU, then mask (mask==0 outside [0, L)
        # reproduces the conv's zero "same"/causal padding exactly).
        h = _layer_norm_f32(xv, g1_ref[...], b1_ref[...])
        h = jnp.maximum(h, 0.0).astype(cd)
        h = jnp.dot(h, w1_ref[...], preferred_element_type=f32) + pb1_ref[...]
        h = _layer_norm_f32(h, g2_ref[...], b2_ref[...])
        h = jnp.maximum(h, 0.0)
        return (h * mv).astype(cd)

    # Masked conv input over the haloed window, assembled in VMEM scratch:
    # rows [0, tile_l) from the current tile, rows [tile_l, tile_l+halo_blk)
    # from the (auto-pipelined) halo view of the next rows.
    h_scr[pl.ds(0, tile_l), :] = sequence1(x_ref[0], m_ref[0])
    if halo > 0:
        h_scr[pl.ds(tile_l, halo_blk), :] = sequence1(xh_ref[0], mh_ref[0])

    # Dilated conv = K accumulated (tile_l, d_h) @ (d_h, d_h) MXU matmuls.
    # Each tap is a static sublane slice at offset t*dilation (no im2col
    # lane-axis concat, which would be misaligned whenever d_h % 128 != 0).
    acc = cb_ref[...] + jnp.dot(h_scr[pl.ds(0, tile_l), :], cw_ref[0],
                                preferred_element_type=f32)
    for t in range(1, kernel_size):
        acc = acc + jnp.dot(h_scr[pl.ds(t * dilation, tile_l), :], cw_ref[t],
                            preferred_element_type=f32)

    # sequence2: LN -> ReLU -> PFF
    c = _layer_norm_f32(acc, g3_ref[...], b3_ref[...])
    c = jnp.maximum(c, 0.0).astype(cd)
    c = jnp.dot(c, w2_ref[...], preferred_element_type=f32) + pb2_ref[...]

    # Residual: the original (unpadded) x rows of this tile live at window
    # rows [left, left + tile_l), i.e. the tail of the current tile plus the
    # first `left` rows of the halo view.
    if left == 0:
        x_mid = x_ref[0]
    else:
        x_mid = jnp.concatenate(
            [x_ref[0, pl.ds(left, tile_l - left), :],
             xh_ref[0, pl.ds(0, left), :]], axis=0)
    o_ref[0] = (x_mid.astype(f32) + c).astype(o_ref.dtype)


def bytenet_block(x, params, *, kernel_size, dilation=1, causal=False,
                  input_mask=None, tile_l=None,
                  compute_dtype=jnp.bfloat16, vmem_limit_bytes=None):
    """ByteNetBlock forward.  x: (B, L, d_in), input_mask: (B, L, 1) or None."""
    B, L, d_in = x.shape
    d_h = params["w1"].shape[1]
    d_out = params["w2"].shape[1]
    assert d_in == d_out, "ByteNetBlock residual add requires d_in == d_out"

    halo = (kernel_size - 1) * dilation
    if not causal:
        assert halo % 2 == 0, (
            "non-causal 'same' conv requires (kernel_size - 1) * dilation even "
            "(otherwise torch's padding changes L and breaks the residual add)")
    left = halo if causal else halo // 2

    # Generation-aware VMEM budget: ~96 MiB scoped on v5e/v6e, ~48 MiB on v7x.
    phys = _physical_vmem_bytes()
    if vmem_limit_bytes is None:
        vmem_limit_bytes = (3 * phys) // 4
    vmem_limit_bytes = min(int(vmem_limit_bytes), phys - (2 << 20))
    budget = max(vmem_limit_bytes - (8 << 20), 4 << 20)

    cd = compute_dtype
    cd_bytes = jnp.dtype(cd).itemsize
    halo_blk = max(8, _next_pow2(halo))  # halo view rows (multiple of 8, divides tile_l)
    if tile_l is None:
        tile_l = _pick_tile_l(L, B, d_in, d_h, d_out, kernel_size, halo_blk,
                              cd_bytes, budget)
    assert tile_l % 8 == 0 and tile_l % halo_blk == 0 and tile_l >= halo, (
        f"tile_l={tile_l} must be a multiple of 8 and of halo_blk={halo_blk}, "
        f"and >= halo={halo}")

    n_l = -(-L // tile_l)
    l_pad = n_l * tile_l
    lp_total = l_pad + halo_blk          # room for the last tile's halo view
    rat = tile_l // halo_blk

    mask = (jnp.ones((B, L, 1), jnp.float32) if input_mask is None
            else input_mask.astype(jnp.float32))

    # Zero-pad the sequence axis: `left` halo rows up front, tail rounding plus
    # halo_blk rows at the back.  Zeroed mask rows == conv zero padding.
    pad_cfg = ((0, 0), (left, lp_total - L - left), (0, 0))
    xp = jnp.pad(x, pad_cfg)
    mp = jnp.pad(mask, pad_cfg)

    f32 = jnp.float32
    weight_args = (
        params["ln1_g"].astype(f32), params["ln1_b"].astype(f32),
        params["w1"].astype(cd), params["b1"].astype(f32),
        params["ln2_g"].astype(f32), params["ln2_b"].astype(f32),
        params["conv_w"].astype(cd),            # (K, d_h, d_h)
        params["conv_b"].astype(f32),
        params["ln3_g"].astype(f32), params["ln3_b"].astype(f32),
        params["w2"].astype(cd), params["b2"].astype(f32),
    )

    def wspec(a):
        return pl.BlockSpec(a.shape, lambda b_, l_, _nd=a.ndim: (0,) * _nd)

    kern = functools.partial(
        _bytenet_block_kernel,
        tile_l=tile_l, halo=halo, halo_blk=halo_blk, left=left,
        kernel_size=kernel_size, dilation=dilation, compute_dtype=cd)

    out = pl.pallas_call(
        kern,
        out_shape=jax.ShapeDtypeStruct((B, l_pad, d_out), x.dtype),
        grid_spec=pltpu.PrefetchScalarGridSpec(
            num_scalar_prefetch=0,
            grid=(B, n_l),
            in_specs=[
                # current tile of x / mask
                pl.BlockSpec((1, tile_l, d_in), lambda b_, l_: (b_, l_, 0)),
                # halo rows right after the tile (auto-pipelined, overlapped)
                pl.BlockSpec((1, halo_blk, d_in),
                             lambda b_, l_: (b_, (l_ + 1) * rat, 0)),
                pl.BlockSpec((1, tile_l, 1), lambda b_, l_: (b_, l_, 0)),
                pl.BlockSpec((1, halo_blk, 1),
                             lambda b_, l_: (b_, (l_ + 1) * rat, 0)),
            ] + [wspec(a) for a in weight_args],
            out_specs=pl.BlockSpec((1, tile_l, d_out), lambda b_, l_: (b_, l_, 0)),
            scratch_shapes=[
                pltpu.VMEM((tile_l + halo_blk, d_h), cd),   # masked conv input
            ],
        ),
        compiler_params=pltpu.CompilerParams(
            dimension_semantics=("parallel", "parallel"),
            vmem_limit_bytes=int(vmem_limit_bytes)),
    )(xp, xp, mp, mp, *weight_args)
    return out[:, :L, :]


# ----------------------------------------------------------------------------
# pure-JAX reference (mirrors the kernel's matmul operand precision)
# ----------------------------------------------------------------------------
def reference_bytenet_block(x, mask, params, *, kernel_size, dilation, causal,
                            compute_dtype=jnp.bfloat16):
    f32 = jnp.float32
    cd = compute_dtype
    prec = jax.lax.Precision.HIGHEST if cd == jnp.float32 else None

    def ln(v, g, b, eps=1e-5):
        mu = jnp.mean(v, axis=-1, keepdims=True)
        var = jnp.mean((v - mu) ** 2, axis=-1, keepdims=True)
        return (v - mu) / jnp.sqrt(var + eps) * g + b

    def mm(a, w):
        return jnp.einsum("bli,io->blo", a.astype(cd), w.astype(cd),
                          preferred_element_type=f32, precision=prec)

    B, L, _ = x.shape
    h = jnp.maximum(ln(x.astype(f32), params["ln1_g"], params["ln1_b"]), 0.0)
    h = mm(h, params["w1"]) + params["b1"]
    h = jnp.maximum(ln(h, params["ln2_g"], params["ln2_b"]), 0.0)
    h = h * mask

    pad = (kernel_size - 1) * dilation if causal else dilation * (kernel_size - 1) // 2
    d_h = params["conv_w"].shape[-1]
    out = jnp.zeros((B, L, d_h), f32)
    idx = jnp.arange(L)
    for t in range(kernel_size):
        src = idx + t * dilation - pad
        valid = (src >= 0) & (src < L)
        ht = jnp.where(valid[None, :, None], h[:, jnp.clip(src, 0, L - 1), :], 0.0)
        out = out + mm(ht, params["conv_w"][t])
    c = out + params["conv_b"]

    c = jnp.maximum(ln(c, params["ln3_g"], params["ln3_b"]), 0.0)
    c = mm(c, params["w2"]) + params["b2"]
    return x + c


# ----------------------------------------------------------------------------
# synthetic parameters
# ----------------------------------------------------------------------------
def init_bytenet_block_params(key, d_in, d_h, d_out, kernel_size):
    ks = jax.random.split(key, 12)

    def nrm(k, shape, s=0.1):
        return (s * jax.random.normal(k, shape)).astype(jnp.float32)

    return dict(
        ln1_g=1.0 + nrm(ks[0], (1, d_in)), ln1_b=nrm(ks[1], (1, d_in)),
        w1=nrm(ks[2], (d_in, d_h)), b1=nrm(ks[3], (1, d_h)),
        ln2_g=1.0 + nrm(ks[4], (1, d_h)), ln2_b=nrm(ks[5], (1, d_h)),
        conv_w=nrm(ks[6], (kernel_size, d_h, d_h)),   # (tap, in, out)
        conv_b=nrm(ks[7], (1, d_h)),
        ln3_g=1.0 + nrm(ks[8], (1, d_h)), ln3_b=nrm(ks[9], (1, d_h)),
        w2=nrm(ks[10], (d_h, d_out)), b2=nrm(ks[11], (1, d_out)),
    )


# ----------------------------------------------------------------------------
if __name__ == "__main__":
    key = jax.random.PRNGKey(0)
    B, L, d_model, d_h = 2, 64, 128, 64
    kx, km, kp1, kp2 = jax.random.split(key, 4)
    x = jax.random.normal(kx, (B, L, d_model), dtype=jnp.float32)
    mask = (jax.random.uniform(km, (B, L, 1)) > 0.2).astype(jnp.float32)

    configs = [
        # (kernel_size, dilation, causal, input_mask, tile_l, param_key)
        (5, 2, False, mask, 32, kp1),    # MaskedConv1d path, forced multi-tile (halo view crossing)
        (3, 4, True, None, None, kp2),   # MaskedCausalConv1d path, auto tile size
    ]
    for ksz, dil, causal, m, tl, pk in configs:
        params = init_bytenet_block_params(pk, d_model, d_h, d_model, ksz)
        ref_mask = m if m is not None else jnp.ones((B, L, 1), jnp.float32)

        # Structural check with f32 matmul operands (tight tolerance).
        out32 = bytenet_block(x, params, kernel_size=ksz, dilation=dil,
                              causal=causal, input_mask=m, tile_l=tl,
                              compute_dtype=jnp.float32)
        out32 = jax.block_until_ready(out32)
        ref32 = reference_bytenet_block(x, ref_mask, params, kernel_size=ksz,
                                        dilation=dil, causal=causal,
                                        compute_dtype=jnp.float32)
        np.testing.assert_allclose(np.asarray(out32), np.asarray(ref32),
                                   atol=5e-3, rtol=5e-3)

        # Fast path: bf16 matmul operands (default), f32 LN / accumulation.
        out16 = bytenet_block(x, params, kernel_size=ksz, dilation=dil,
                              causal=causal, input_mask=m, tile_l=tl)
        out16 = jax.block_until_ready(out16)
        ref16 = reference_bytenet_block(x, ref_mask, params, kernel_size=ksz,
                                        dilation=dil, causal=causal,
                                        compute_dtype=jnp.bfloat16)
        assert out16.shape == (B, L, d_model)
        np.testing.assert_allclose(np.asarray(out16), np.asarray(ref16),
                                   atol=1e-2, rtol=1e-2)

    print("KERNEL_OK")
</pallas_src>

<mosaic_0001>
module attributes {stable_mosaic.version = 11 : i64} {
  func.func @_bytenet_block_kernel(%arg0: i32, %arg1: i32, %arg2: memref<1x32x128xf32, #tpu.memory_space<vmem>>, %arg3: memref<1x8x128xf32, #tpu.memory_space<vmem>>, %arg4: memref<1x32x1xf32, #tpu.memory_space<vmem>>, %arg5: memref<1x8x1xf32, #tpu.memory_space<vmem>>, %arg6: memref<1x128xf32, #tpu.memory_space<vmem>>, %arg7: memref<1x128xf32, #tpu.memory_space<vmem>>, %arg8: memref<128x64xf32, #tpu.memory_space<vmem>>, %arg9: memref<1x64xf32, #tpu.memory_space<vmem>>, %arg10: memref<1x64xf32, #tpu.memory_space<vmem>>, %arg11: memref<1x64xf32, #tpu.memory_space<vmem>>, %arg12: memref<5x64x64xf32, #tpu.memory_space<vmem>>, %arg13: memref<1x64xf32, #tpu.memory_space<vmem>>, %arg14: memref<1x64xf32, #tpu.memory_space<vmem>>, %arg15: memref<1x64xf32, #tpu.memory_space<vmem>>, %arg16: memref<64x128xf32, #tpu.memory_space<vmem>>, %arg17: memref<1x128xf32, #tpu.memory_space<vmem>>, %arg18: memref<1x32x128xf32, #tpu.memory_space<vmem>>, %arg19: memref<40x64xf32, #tpu.memory_space<vmem>>) attributes {dimension_semantics = [#tpu.dimension_semantics<parallel>, #tpu.dimension_semantics<parallel>], iteration_bounds = array<i64: 2, 2>, scalar_prefetch = 0 : i64, scratch_operands = 1 : i64, tpu.core_type = #tpu.core_type<tc>, window_params = [{transform_indices = @transform_0, window_bounds = array<i64: 1, 32, 128>}, {transform_indices = @transform_1, window_bounds = array<i64: 1, 8, 128>}, {transform_indices = @transform_2, window_bounds = array<i64: 1, 32, 1>}, {transform_indices = @transform_3, window_bounds = array<i64: 1, 8, 1>}, {pipeline_mode = #tpu.pipeline_mode<synchronous>, transform_indices = @transform_4, window_bounds = array<i64: 1, 128>}, {pipeline_mode = #tpu.pipeline_mode<synchronous>, transform_indices = @transform_5, window_bounds = array<i64: 1, 128>}, {pipeline_mode = #tpu.pipeline_mode<synchronous>, transform_indices = @transform_6, window_bounds = array<i64: 128, 64>}, {pipeline_mode = #tpu.pipeline_mode<synchronous>, transform_indices = @transform_7, window_bounds = array<i64: 1, 64>}, {pipeline_mode = #tpu.pipeline_mode<synchronous>, transform_indices = @transform_8, window_bounds = array<i64: 1, 64>}, {pipeline_mode = #tpu.pipeline_mode<synchronous>, transform_indices = @transform_9, window_bounds = array<i64: 1, 64>}, {pipeline_mode = #tpu.pipeline_mode<synchronous>, transform_indices = @transform_10, window_bounds = array<i64: 5, 64, 64>}, {pipeline_mode = #tpu.pipeline_mode<synchronous>, transform_indices = @transform_11, window_bounds = array<i64: 1, 64>}, {pipeline_mode = #tpu.pipeline_mode<synchronous>, transform_indices = @transform_12, window_bounds = array<i64: 1, 64>}, {pipeline_mode = #tpu.pipeline_mode<synchronous>, transform_indices = @transform_13, window_bounds = array<i64: 1, 64>}, {pipeline_mode = #tpu.pipeline_mode<synchronous>, transform_indices = @transform_14, window_bounds = array<i64: 64, 128>}, {pipeline_mode = #tpu.pipeline_mode<synchronous>, transform_indices = @transform_15, window_bounds = array<i64: 1, 128>}, {transform_indices = @transform_16, window_bounds = array<i64: 1, 32, 128>}]} {
    %c0 = arith.constant 0 : index
    %c0_0 = arith.constant 0 : index
    %c0_1 = arith.constant 0 : index
    %0 = vector.load %arg2[%c0, %c0_0, %c0_1] : memref<1x32x128xf32, #tpu.memory_space<vmem>>, vector<1x32x128xf32>
    %1 = vector.shape_cast %0 : vector<1x32x128xf32> to vector<32x128xf32>
    %c0_2 = arith.constant 0 : index
    %c0_3 = arith.constant 0 : index
    %c0_4 = arith.constant 0 : index
    %2 = vector.load %arg4[%c0_2, %c0_3, %c0_4] : memref<1x32x1xf32, #tpu.memory_space<vmem>>, vector<1x32x1xf32>
    %3 = vector.shape_cast %2 : vector<1x32x1xf32> to vector<32x1xf32>
    %c0_5 = arith.constant 0 : index
    %c0_6 = arith.constant 0 : index
    %4 = vector.load %arg6[%c0_5, %c0_6] : memref<1x128xf32, #tpu.memory_space<vmem>>, vector<1x128xf32>
    %c0_7 = arith.constant 0 : index
    %c0_8 = arith.constant 0 : index
    %5 = vector.load %arg7[%c0_7, %c0_8] : memref<1x128xf32, #tpu.memory_space<vmem>>, vector<1x128xf32>
    %cst = arith.constant dense<0.000000e+00> : vector<32xf32>
    %6 = vector.multi_reduction <add>, %1, %cst [1] : vector<32x128xf32> to vector<32xf32>
    %7 = vector.shape_cast %6 : vector<32xf32> to vector<32x1xf32>
    %cst_9 = arith.constant 1.280000e+02 : f32
    %8 = vector.broadcast %cst_9 : f32 to vector<32x1xf32>
    %9 = arith.divf %7, %8 : vector<32x1xf32>
    %10 = vector.broadcast %9 : vector<32x1xf32> to vector<32x128xf32>
    %11 = arith.subf %1, %10 : vector<32x128xf32>
    %12 = arith.mulf %11, %11 : vector<32x128xf32>
    %cst_10 = arith.constant dense<0.000000e+00> : vector<32xf32>
    %13 = vector.multi_reduction <add>, %12, %cst_10 [1] : vector<32x128xf32> to vector<32xf32>
    %14 = vector.shape_cast %13 : vector<32xf32> to vector<32x1xf32>
    %cst_11 = arith.constant 1.280000e+02 : f32
    %15 = vector.broadcast %cst_11 : f32 to vector<32x1xf32>
    %16 = arith.divf %14, %15 : vector<32x1xf32>
    %17 = vector.broadcast %9 : vector<32x1xf32> to vector<32x128xf32>
    %18 = arith.subf %1, %17 : vector<32x128xf32>
    %cst_12 = arith.constant 9.99999974E-6 : f32
    %19 = vector.broadcast %cst_12 : f32 to vector<32x1xf32>
    %20 = arith.addf %16, %19 : vector<32x1xf32>
    %21 = math.rsqrt %20 : vector<32x1xf32>
    %22 = vector.broadcast %21 : vector<32x1xf32> to vector<32x128xf32>
    %23 = arith.mulf %18, %22 : vector<32x128xf32>
    %24 = vector.broadcast %4 : vector<1x128xf32> to vector<32x128xf32>
    %25 = arith.mulf %23, %24 : vector<32x128xf32>
    %26 = vector.broadcast %5 : vector<1x128xf32> to vector<32x128xf32>
    %27 = arith.addf %25, %26 : vector<32x128xf32>
    %cst_13 = arith.constant 0.000000e+00 : f32
    %28 = vector.broadcast %cst_13 : f32 to vector<32x128xf32>
    %29 = arith.maximumf %27, %28 : vector<32x128xf32>
    %c0_14 = arith.constant 0 : index
    %c0_15 = arith.constant 0 : index
    %30 = vector.load %arg8[%c0_14, %c0_15] : memref<128x64xf32, #tpu.memory_space<vmem>>, vector<128x64xf32>
    %cst_16 = arith.constant dense<0.000000e+00> : vector<32x64xf32>
    %31 = tpu.matmul %29, %30, %cst_16 {dimension_numbers = #tpu.dot_dimension_numbers<[1], [0], [0], [1], [0, 0, 1, 1], [], []>} : vector<32x128xf32>, vector<128x64xf32>, vector<32x64xf32> -> vector<32x64xf32>
    %c0_17 = arith.constant 0 : index
    %c0_18 = arith.constant 0 : index
    %32 = vector.load %arg9[%c0_17, %c0_18] : memref<1x64xf32, #tpu.memory_space<vmem>>, vector<1x64xf32>
    %33 = vector.broadcast %32 : vector<1x64xf32> to vector<32x64xf32>
    %34 = arith.addf %31, %33 : vector<32x64xf32>
    %c0_19 = arith.constant 0 : index
    %c0_20 = arith.constant 0 : index
    %35 = vector.load %arg10[%c0_19, %c0_20] : memref<1x64xf32, #tpu.memory_space<vmem>>, vector<1x64xf32>
    %c0_21 = arith.constant 0 : index
    %c0_22 = arith.constant 0 : index
    %36 = vector.load %arg11[%c0_21, %c0_22] : memref<1x64xf32, #tpu.memory_space<vmem>>, vector<1x64xf32>
    %cst_23 = arith.constant dense<0.000000e+00> : vector<32xf32>
    %37 = vector.multi_reduction <add>, %34, %cst_23 [1] : vector<32x64xf32> to vector<32xf32>
    %38 = vector.shape_cast %37 : vector<32xf32> to vector<32x1xf32>
    %cst_24 = arith.constant 6.400000e+01 : f32
    %39 = vector.broadcast %cst_24 : f32 to vector<32x1xf32>
    %40 = arith.divf %38, %39 : vector<32x1xf32>
    %41 = vector.broadcast %40 : vector<32x1xf32> to vector<32x64xf32>
    %42 = arith.subf %34, %41 : vector<32x64xf32>
    %43 = arith.mulf %42, %42 : vector<32x64xf32>
    %cst_25 = arith.constant dense<0.000000e+00> : vector<32xf32>
    %44 = vector.multi_reduction <add>, %43, %cst_25 [1] : vector<32x64xf32> to vector<32xf32>
    %45 = vector.shape_cast %44 : vector<32xf32> to vector<32x1xf32>
    %cst_26 = arith.constant 6.400000e+01 : f32
    %46 = vector.broadcast %cst_26 : f32 to vector<32x1xf32>
    %47 = arith.divf %45, %46 : vector<32x1xf32>
    %48 = vector.broadcast %40 : vector<32x1xf32> to vector<32x64xf32>
    %49 = arith.subf %34, %48 : vector<32x64xf32>
    %cst_27 = arith.constant 9.99999974E-6 : f32
    %50 = vector.broadcast %cst_27 : f32 to vector<32x1xf32>
    %51 = arith.addf %47, %50 : vector<32x1xf32>
    %52 = math.rsqrt %51 : vector<32x1xf32>
    %53 = vector.broadcast %52 : vector<32x1xf32> to vector<32x64xf32>
    %54 = arith.mulf %49, %53 : vector<32x64xf32>
    %55 = vector.broadcast %35 : vector<1x64xf32> to vector<32x64xf32>
    %56 = arith.mulf %54, %55 : vector<32x64xf32>
    %57 = vector.broadcast %36 : vector<1x64xf32> to vector<32x64xf32>
    %58 = arith.addf %56, %57 : vector<32x64xf32>
    %cst_28 = arith.constant 0.000000e+00 : f32
    %59 = vector.broadcast %cst_28 : f32 to vector<32x64xf32>
    %60 = arith.maximumf %58, %59 : vector<32x64xf32>
    %61 = vector.broadcast %3 : vector<32x1xf32> to vector<32x64xf32>
    %62 = arith.mulf %60, %61 : vector<32x64xf32>
    %c0_29 = arith.constant 0 : index
    %c0_30 = arith.constant 0 : index
    %63 = vector.load %arg19[%c0_29, %c0_30] : memref<40x64xf32, #tpu.memory_space<vmem>>, vector<32x64xf32>
    tpu.vector_store %arg19[%c0_29, %c0_30], %62 {strides = array<i32>} : memref<40x64xf32, #tpu.memory_space<vmem>>, vector<32x64xf32>,
    %c0_31 = arith.constant 0 : index
    %c0_32 = arith.constant 0 : index
    %c0_33 = arith.constant 0 : index
    %64 = vector.load %arg3[%c0_31, %c0_32, %c0_33] : memref<1x8x128xf32, #tpu.memory_space<vmem>>, vector<1x8x128xf32>
    %65 = vector.shape_cast %64 : vector<1x8x128xf32> to vector<8x128xf32>
    %c0_34 = arith.constant 0 : index
    %c0_35 = arith.constant 0 : index
    %c0_36 = arith.constant 0 : index
    %66 = vector.load %arg5[%c0_34, %c0_35, %c0_36] : memref<1x8x1xf32, #tpu.memory_space<vmem>>, vector<1x8x1xf32>
    %67 = vector.shape_cast %66 : vector<1x8x1xf32> to vector<8x1xf32>
    %c0_37 = arith.constant 0 : index
    %c0_38 = arith.constant 0 : index
    %68 = vector.load %arg6[%c0_37, %c0_38] : memref<1x128xf32, #tpu.memory_space<vmem>>, vector<1x128xf32>
    %c0_39 = arith.constant 0 : index
    %c0_40 = arith.constant 0 : index
    %69 = vector.load %arg7[%c0_39, %c0_40] : memref<1x128xf32, #tpu.memory_space<vmem>>, vector<1x128xf32>
    %cst_41 = arith.constant dense<0.000000e+00> : vector<8xf32>
    %70 = vector.multi_reduction <add>, %65, %cst_41 [1] : vector<8x128xf32> to vector<8xf32>
    %71 = vector.shape_cast %70 : vector<8xf32> to vector<8x1xf32>
    %cst_42 = arith.constant 1.280000e+02 : f32
    %72 = vector.broadcast %cst_42 : f32 to vector<8x1xf32>
    %73 = arith.divf %71, %72 : vector<8x1xf32>
    %74 = vector.broadcast %73 : vector<8x1xf32> to vector<8x128xf32>
    %75 = arith.subf %65, %74 : vector<8x128xf32>
    %76 = arith.mulf %75, %75 : vector<8x128xf32>
    %cst_43 = arith.constant dense<0.000000e+00> : vector<8xf32>
    %77 = vector.multi_reduction <add>, %76, %cst_43 [1] : vector<8x128xf32> to vector<8xf32>
    %78 = vector.shape_cast %77 : vector<8xf32> to vector<8x1xf32>
    %cst_44 = arith.constant 1.280000e+02 : f32
    %79 = vector.broadcast %cst_44 : f32 to vector<8x1xf32>
    %80 = arith.divf %78, %79 : vector<8x1xf32>
    %81 = vector.broadcast %73 : vector<8x1xf32> to vector<8x128xf32>
    %82 = arith.subf %65, %81 : vector<8x128xf32>
    %cst_45 = arith.constant 9.99999974E-6 : f32
    %83 = vector.broadcast %cst_45 : f32 to vector<8x1xf32>
    %84 = arith.addf %80, %83 : vector<8x1xf32>
    %85 = math.rsqrt %84 : vector<8x1xf32>
    %86 = vector.broadcast %85 : vector<8x1xf32> to vector<8x128xf32>
    %87 = arith.mulf %82, %86 : vector<8x128xf32>
    %88 = vector.broadcast %68 : vector<1x128xf32> to vector<8x128xf32>
    %89 = arith.mulf %87, %88 : vector<8x128xf32>
    %90 = vector.broadcast %69 : vector<1x128xf32> to vector<8x128xf32>
    %91 = arith.addf %89, %90 : vector<8x128xf32>
    %cst_46 = arith.constant 0.000000e+00 : f32
    %92 = vector.broadcast %cst_46 : f32 to vector<8x128xf32>
    %93 = arith.maximumf %91, %92 : vector<8x128xf32>
    %c0_47 = arith.constant 0 : index
    %c0_48 = arith.constant 0 : index
    %94 = vector.load %arg8[%c0_47, %c0_48] : memref<128x64xf32, #tpu.memory_space<vmem>>, vector<128x64xf32>
    %cst_49 = arith.constant dense<0.000000e+00> : vector<8x64xf32>
    %95 = tpu.matmul %93, %94, %cst_49 {dimension_numbers = #tpu.dot_dimension_numbers<[1], [0], [0], [1], [0, 0, 1, 1], [], []>} : vector<8x128xf32>, vector<128x64xf32>, vector<8x64xf32> -> vector<8x64xf32>
    %c0_50 = arith.constant 0 : index
    %c0_51 = arith.constant 0 : index
    %96 = vector.load %arg9[%c0_50, %c0_51] : memref<1x64xf32, #tpu.memory_space<vmem>>, vector<1x64xf32>
    %97 = vector.broadcast %96 : vector<1x64xf32> to vector<8x64xf32>
    %98 = arith.addf %95, %97 : vector<8x64xf32>
    %c0_52 = arith.constant 0 : index
    %c0_53 = arith.constant 0 : index
    %99 = vector.load %arg10[%c0_52, %c0_53] : memref<1x64xf32, #tpu.memory_space<vmem>>, vector<1x64xf32>
    %c0_54 = arith.constant 0 : index
    %c0_55 = arith.constant 0 : index
    %100 = vector.load %arg11[%c0_54, %c0_55] : memref<1x64xf32, #tpu.memory_space<vmem>>, vector<1x64xf32>
    %cst_56 = arith.constant dense<0.000000e+00> : vector<8xf32>
    %101 = vector.multi_reduction <add>, %98, %cst_56 [1] : vector<8x64xf32> to vector<8xf32>
    %102 = vector.shape_cast %101 : vector<8xf32> to vector<8x1xf32>
    %cst_57 = arith.constant 6.400000e+01 : f32
    %103 = vector.broadcast %cst_57 : f32 to vector<8x1xf32>
    %104 = arith.divf %102, %103 : vector<8x1xf32>
    %105 = vector.broadcast %104 : vector<8x1xf32> to vector<8x64xf32>
    %106 = arith.subf %98, %105 : vector<8x64xf32>
    %107 = arith.mulf %106, %106 : vector<8x64xf32>
    %cst_58 = arith.constant dense<0.000000e+00> : vector<8xf32>
    %108 = vector.multi_reduction <add>, %107, %cst_58 [1] : vector<8x64xf32> to vector<8xf32>
    %109 = vector.shape_cast %108 : vector<8xf32> to vector<8x1xf32>
    %cst_59 = arith.constant 6.400000e+01 : f32
    %110 = vector.broadcast %cst_59 : f32 to vector<8x1xf32>
    %111 = arith.divf %109, %110 : vector<8x1xf32>
    %112 = vector.broadcast %104 : vector<8x1xf32> to vector<8x64xf32>
    %113 = arith.subf %98, %112 : vector<8x64xf32>
    %cst_60 = arith.constant 9.99999974E-6 : f32
    %114 = vector.broadcast %cst_60 : f32 to vector<8x1xf32>
    %115 = arith.addf %111, %114 : vector<8x1xf32>
    %116 = math.rsqrt %115 : vector<8x1xf32>
    %117 = vector.broadcast %116 : vector<8x1xf32> to vector<8x64xf32>
    %118 = arith.mulf %113, %117 : vector<8x64xf32>
    %119 = vector.broadcast %99 : vector<1x64xf32> to vector<8x64xf32>
    %120 = arith.mulf %118, %119 : vector<8x64xf32>
    %121 = vector.broadcast %100 : vector<1x64xf32> to vector<8x64xf32>
    %122 = arith.addf %120, %121 : vector<8x64xf32>
    %cst_61 = arith.constant 0.000000e+00 : f32
    %123 = vector.broadcast %cst_61 : f32 to vector<8x64xf32>
    %124 = arith.maximumf %122, %123 : vector<8x64xf32>
    %125 = vector.broadcast %67 : vector<8x1xf32> to vector<8x64xf32>
    %126 = arith.mulf %124, %125 : vector<8x64xf32>
    %c32 = arith.constant 32 : index
    %c0_62 = arith.constant 0 : index
    %127 = vector.load %arg19[%c32, %c0_62] : memref<40x64xf32, #tpu.memory_space<vmem>>, vector<8x64xf32>
    tpu.vector_store %arg19[%c32, %c0_62], %126 {strides = array<i32>} : memref<40x64xf32, #tpu.memory_space<vmem>>, vector<8x64xf32>,
    %c0_63 = arith.constant 0 : index
    %c0_64 = arith.constant 0 : index
    %128 = vector.load %arg13[%c0_63, %c0_64] : memref<1x64xf32, #tpu.memory_space<vmem>>, vector<1x64xf32>
    %c0_65 = arith.constant 0 : index
    %c0_66 = arith.constant 0 : index
    %129 = vector.load %arg19[%c0_65, %c0_66] : memref<40x64xf32, #tpu.memory_space<vmem>>, vector<32x64xf32>
    %c0_67 = arith.constant 0 : index
    %c0_68 = arith.constant 0 : index
    %c0_69 = arith.constant 0 : index
    %130 = vector.load %arg12[%c0_67, %c0_68, %c0_69] : memref<5x64x64xf32, #tpu.memory_space<vmem>>, vector<1x64x64xf32>
    %131 = vector.shape_cast %130 : vector<1x64x64xf32> to vector<64x64xf32>
    %cst_70 = arith.constant dense<0.000000e+00> : vector<32x64xf32>
    %132 = tpu.matmul %129, %131, %cst_70 {dimension_numbers = #tpu.dot_dimension_numbers<[1], [0], [0], [1], [0, 0, 1, 1], [], []>} : vector<32x64xf32>, vector<64x64xf32>, vector<32x64xf32> -> vector<32x64xf32>
    %133 = vector.broadcast %128 : vector<1x64xf32> to vector<32x64xf32>
    %134 = arith.addf %133, %132 : vector<32x64xf32>
    %c2 = arith.constant 2 : index
    %c0_71 = arith.constant 0 : index
    %135 = vector.load %arg19[%c2, %c0_71] : memref<40x64xf32, #tpu.memory_space<vmem>>, vector<32x64xf32>
    %c1 = arith.constant 1 : index
    %c0_72 = arith.constant 0 : index
    %c0_73 = arith.constant 0 : index
    %136 = vector.load %arg12[%c1, %c0_72, %c0_73] : memref<5x64x64xf32, #tpu.memory_space<vmem>>, vector<1x64x64xf32>
    %137 = vector.shape_cast %136 : vector<1x64x64xf32> to vector<64x64xf32>
    %cst_74 = arith.constant dense<0.000000e+00> : vector<32x64xf32>
    %138 = tpu.matmul %135, %137, %cst_74 {dimension_numbers = #tpu.dot_dimension_numbers<[1], [0], [0], [1], [0, 0, 1, 1], [], []>} : vector<32x64xf32>, vector<64x64xf32>, vector<32x64xf32> -> vector<32x64xf32>
    %139 = arith.addf %134, %138 : vector<32x64xf32>
    %c4 = arith.constant 4 : index
    %c0_75 = arith.constant 0 : index
    %140 = vector.load %arg19[%c4, %c0_75] : memref<40x64xf32, #tpu.memory_space<vmem>>, vector<32x64xf32>
    %c2_76 = arith.constant 2 : index
    %c0_77 = arith.constant 0 : index
    %c0_78 = arith.constant 0 : index
    %141 = vector.load %arg12[%c2_76, %c0_77, %c0_78] : memref<5x64x64xf32, #tpu.memory_space<vmem>>, vector<1x64x64xf32>
    %142 = vector.shape_cast %141 : vector<1x64x64xf32> to vector<64x64xf32>
    %cst_79 = arith.constant dense<0.000000e+00> : vector<32x64xf32>
    %143 = tpu.matmul %140, %142, %cst_79 {dimension_numbers = #tpu.dot_dimension_numbers<[1], [0], [0], [1], [0, 0, 1, 1], [], []>} : vector<32x64xf32>, vector<64x64xf32>, vector<32x64xf32> -> vector<32x64xf32>
    %144 = arith.addf %139, %143 : vector<32x64xf32>
    %c6 = arith.constant 6 : index
    %c0_80 = arith.constant 0 : index
    %145 = vector.load %arg19[%c6, %c0_80] : memref<40x64xf32, #tpu.memory_space<vmem>>, vector<32x64xf32>
    %c3 = arith.constant 3 : index
    %c0_81 = arith.constant 0 : index
    %c0_82 = arith.constant 0 : index
    %146 = vector.load %arg12[%c3, %c0_81, %c0_82] : memref<5x64x64xf32, #tpu.memory_space<vmem>>, vector<1x64x64xf32>
    %147 = vector.shape_cast %146 : vector<1x64x64xf32> to vector<64x64xf32>
    %cst_83 = arith.constant dense<0.000000e+00> : vector<32x64xf32>
    %148 = tpu.matmul %145, %147, %cst_83 {dimension_numbers = #tpu.dot_dimension_numbers<[1], [0], [0], [1], [0, 0, 1, 1], [], []>} : vector<32x64xf32>, vector<64x64xf32>, vector<32x64xf32> -> vector<32x64xf32>
    %149 = arith.addf %144, %148 : vector<32x64xf32>
    %c8 = arith.constant 8 : index
    %c0_84 = arith.constant 0 : index
    %150 = vector.load %arg19[%c8, %c0_84] : memref<40x64xf32, #tpu.memory_space<vmem>>, vector<32x64xf32>
    %c4_85 = arith.constant 4 : index
    %c0_86 = arith.constant 0 : index
    %c0_87 = arith.constant 0 : index
    %151 = vector.load %arg12[%c4_85, %c0_86, %c0_87] : memref<5x64x64xf32, #tpu.memory_space<vmem>>, vector<1x64x64xf32>
    %152 = vector.shape_cast %151 : vector<1x64x64xf32> to vector<64x64xf32>
    %cst_88 = arith.constant dense<0.000000e+00> : vector<32x64xf32>
    %153 = tpu.matmul %150, %152, %cst_88 {dimension_numbers = #tpu.dot_dimension_numbers<[1], [0], [0], [1], [0, 0, 1, 1], [], []>} : vector<32x64xf32>, vector<64x64xf32>, vector<32x64xf32> -> vector<32x64xf32>
    %154 = arith.addf %149, %153 : vector<32x64xf32>
    %c0_89 = arith.constant 0 : index
    %c0_90 = arith.constant 0 : index
    %155 = vector.load %arg14[%c0_89, %c0_90] : memref<1x64xf32, #tpu.memory_space<vmem>>, vector<1x64xf32>
    %c0_91 = arith.constant 0 : index
    %c0_92 = arith.constant 0 : index
    %156 = vector.load %arg15[%c0_91, %c0_92] : memref<1x64xf32, #tpu.memory_space<vmem>>, vector<1x64xf32>
    %cst_93 = arith.constant dense<0.000000e+00> : vector<32xf32>
    %157 = vector.multi_reduction <add>, %154, %cst_93 [1] : vector<32x64xf32> to vector<32xf32>
    %158 = vector.shape_cast %157 : vector<32xf32> to vector<32x1xf32>
    %cst_94 = arith.constant 6.400000e+01 : f32
    %159 = vector.broadcast %cst_94 : f32 to vector<32x1xf32>
    %160 = arith.divf %158, %159 : vector<32x1xf32>
    %161 = vector.broadcast %160 : vector<32x1xf32> to vector<32x64xf32>
    %162 = arith.subf %154, %161 : vector<32x64xf32>
    %163 = arith.mulf %162, %162 : vector<32x64xf32>
    %cst_95 = arith.constant dense<0.000000e+00> : vector<32xf32>
    %164 = vector.multi_reduction <add>, %163, %cst_95 [1] : vector<32x64xf32> to vector<32xf32>
    %165 = vector.shape_cast %164 : vector<32xf32> to vector<32x1xf32>
    %cst_96 = arith.constant 6.400000e+01 : f32
    %166 = vector.broadcast %cst_96 : f32 to vector<32x1xf32>
    %167 = arith.divf %165, %166 : vector<32x1xf32>
    %168 = vector.broadcast %160 : vector<32x1xf32> to vector<32x64xf32>
    %169 = arith.subf %154, %168 : vector<32x64xf32>
    %cst_97 = arith.constant 9.99999974E-6 : f32
    %170 = vector.broadcast %cst_97 : f32 to vector<32x1xf32>
    %171 = arith.addf %167, %170 : vector<32x1xf32>
    %172 = math.rsqrt %171 : vector<32x1xf32>
    %173 = vector.broadcast %172 : vector<32x1xf32> to vector<32x64xf32>
    %174 = arith.mulf %169, %173 : vector<32x64xf32>
    %175 = vector.broadcast %155 : vector<1x64xf32> to vector<32x64xf32>
    %176 = arith.mulf %174, %175 : vector<32x64xf32>
    %177 = vector.broadcast %156 : vector<1x64xf32> to vector<32x64xf32>
    %178 = arith.addf %176, %177 : vector<32x64xf32>
    %cst_98 = arith.constant 0.000000e+00 : f32
    %179 = vector.broadcast %cst_98 : f32 to vector<32x64xf32>
    %180 = arith.maximumf %178, %179 : vector<32x64xf32>
    %c0_99 = arith.constant 0 : index
    %c0_100 = arith.constant 0 : index
    %181 = vector.load %arg16[%c0_99, %c0_100] : memref<64x128xf32, #tpu.memory_space<vmem>>, vector<64x128xf32>
    %cst_101 = arith.constant dense<0.000000e+00> : vector<32x128xf32>
    %182 = tpu.matmul %180, %181, %cst_101 {dimension_numbers = #tpu.dot_dimension_numbers<[1], [0], [0], [1], [0, 0, 1, 1], [], []>} : vector<32x64xf32>, vector<64x128xf32>, vector<32x128xf32> -> vector<32x128xf32>
    %c0_102 = arith.constant 0 : index
    %c0_103 = arith.constant 0 : index
    %183 = vector.load %arg17[%c0_102, %c0_103] : memref<1x128xf32, #tpu.memory_space<vmem>>, vector<1x128xf32>
    %184 = vector.broadcast %183 : vector<1x128xf32> to vector<32x128xf32>
    %185 = arith.addf %182, %184 : vector<32x128xf32>
    %c0_104 = arith.constant 0 : index
    %c4_105 = arith.constant 4 : index
    %c0_106 = arith.constant 0 : index
    %186 = vector.load %arg2[%c0_104, %c4_105, %c0_106] : memref<1x32x128xf32, #tpu.memory_space<vmem>>, vector<1x28x128xf32>
    %187 = vector.shape_cast %186 : vector<1x28x128xf32> to vector<28x128xf32>
    %c0_107 = arith.constant 0 : index
    %c0_108 = arith.constant 0 : index
    %c0_109 = arith.constant 0 : index
    %188 = vector.load %arg3[%c0_107, %c0_108, %c0_109] : memref<1x8x128xf32, #tpu.memory_space<vmem>>, vector<1x4x128xf32>
    %189 = vector.shape_cast %188 : vector<1x4x128xf32> to vector<4x128xf32>
    %190 = tpu.concatenate %187, %189 in 0 : vector<28x128xf32>, vector<4x128xf32> -> vector<32x128xf32>
    %191 = arith.addf %190, %185 : vector<32x128xf32>
    %c0_110 = arith.constant 0 : index
    %c0_111 = arith.constant 0 : index
    %c0_112 = arith.constant 0 : index
    %192 = vector.load %arg18[%c0_110, %c0_111, %c0_112] : memref<1x32x128xf32, #tpu.memory_space<vmem>>, vector<1x32x128xf32>
    %193 = vector.shape_cast %192 : vector<1x32x128xf32> to vector<32x128xf32>
    %194 = vector.shape_cast %191 : vector<32x128xf32> to vector<1x32x128xf32>
    tpu.vector_store %arg18[%c0_110, %c0_111, %c0_112], %194 {strides = array<i32>} : memref<1x32x128xf32, #tpu.memory_space<vmem>>, vector<1x32x128xf32>,
    return
  }
  func.func @transform_0(%arg0: i32, %arg1: i32) -> (i32, i32, i32) {
    %c0_i32 = arith.constant 0 : i32
    %c0_i32_0 = arith.constant 0 : i32
    return %arg0, %arg1, %c0_i32 : i32, i32, i32
  }
  func.func @transform_1(%arg0: i32, %arg1: i32) -> (i32, i32, i32) {
    %c1_i32 = arith.constant 1 : i32
    %0 = arith.addi %arg1, %c1_i32 : i32
    %c4_i32 = arith.constant 4 : i32
    %1 = arith.muli %0, %c4_i32 : i32
    %c0_i32 = arith.constant 0 : i32
    %c0_i32_0 = arith.constant 0 : i32
    return %arg0, %1, %c0_i32 : i32, i32, i32
  }
  func.func @transform_2(%arg0: i32, %arg1: i32) -> (i32, i32, i32) {
    %c0_i32 = arith.constant 0 : i32
    %c0_i32_0 = arith.constant 0 : i32
    return %arg0, %arg1, %c0_i32 : i32, i32, i32
  }
  func.func @transform_3(%arg0: i32, %arg1: i32) -> (i32, i32, i32) {
    %c1_i32 = arith.constant 1 : i32
    %0 = arith.addi %arg1, %c1_i32 : i32
    %c4_i32 = arith.constant 4 : i32
    %1 = arith.muli %0, %c4_i32 : i32
    %c0_i32 = arith.constant 0 : i32
    %c0_i32_0 = arith.constant 0 : i32
    return %arg0, %1, %c0_i32 : i32, i32, i32
  }
  func.func @transform_4(%arg0: i32, %arg1: i32) -> (i32, i32) {
    %c0_i32 = arith.constant 0 : i32
    %c0_i32_0 = arith.constant 0 : i32
    %c0_i32_1 = arith.constant 0 : i32
    return %c0_i32, %c0_i32_0 : i32, i32
  }
  func.func @transform_5(%arg0: i32, %arg1: i32) -> (i32, i32) {
    %c0_i32 = arith.constant 0 : i32
    %c0_i32_0 = arith.constant 0 : i32
    %c0_i32_1 = arith.constant 0 : i32
    return %c0_i32, %c0_i32_0 : i32, i32
  }
  func.func @transform_6(%arg0: i32, %arg1: i32) -> (i32, i32) {
    %c0_i32 = arith.constant 0 : i32
    %c0_i32_0 = arith.constant 0 : i32
    %c0_i32_1 = arith.constant 0 : i32
    return %c0_i32, %c0_i32_0 : i32, i32
  }
  func.func @transform_7(%arg0: i32, %arg1: i32) -> (i32, i32) {
    %c0_i32 = arith.constant 0 : i32
    %c0_i32_0 = arith.constant 0 : i32
    %c0_i32_1 = arith.constant 0 : i32
    return %c0_i32, %c0_i32_0 : i32, i32
  }
  func.func @transform_8(%arg0: i32, %arg1: i32) -> (i32, i32) {
    %c0_i32 = arith.constant 0 : i32
    %c0_i32_0 = arith.constant 0 : i32
    %c0_i32_1 = arith.constant 0 : i32
    return %c0_i32, %c0_i32_0 : i32, i32
  }
  func.func @transform_9(%arg0: i32, %arg1: i32) -> (i32, i32) {
    %c0_i32 = arith.constant 0 : i32
    %c0_i32_0 = arith.constant 0 : i32
    %c0_i32_1 = arith.constant 0 : i32
    return %c0_i32, %c0_i32_0 : i32, i32
  }
  func.func @transform_10(%arg0: i32, %arg1: i32) -> (i32, i32, i32) {
    %c0_i32 = arith.constant 0 : i32
    %c0_i32_0 = arith.constant 0 : i32
    %c0_i32_1 = arith.constant 0 : i32
    %c0_i32_2 = arith.constant 0 : i32
    return %c0_i32, %c0_i32_0, %c0_i32_1 : i32, i32, i32
  }
  func.func @transform_11(%arg0: i32, %arg1: i32) -> (i32, i32) {
    %c0_i32 = arith.constant 0 : i32
    %c0_i32_0 = arith.constant 0 : i32
    %c0_i32_1 = arith.constant 0 : i32
    return %c0_i32, %c0_i32_0 : i32, i32
  }
  func.func @transform_12(%arg0: i32, %arg1: i32) -> (i32, i32) {
    %c0_i32 = arith.constant 0 : i32
    %c0_i32_0 = arith.constant 0 : i32
    %c0_i32_1 = arith.constant 0 : i32
    return %c0_i32, %c0_i32_0 : i32, i32
  }
  func.func @transform_13(%arg0: i32, %arg1: i32) -> (i32, i32) {
    %c0_i32 = arith.constant 0 : i32
    %c0_i32_0 = arith.constant 0 : i32
    %c0_i32_1 = arith.constant 0 : i32
    return %c0_i32, %c0_i32_0 : i32, i32
  }
  func.func @transform_14(%arg0: i32, %arg1: i32) -> (i32, i32) {
    %c0_i32 = arith.constant 0 : i32
    %c0_i32_0 = arith.constant 0 : i32
    %c0_i32_1 = arith.constant 0 : i32
    return %c0_i32, %c0_i32_0 : i32, i32
  }
  func.func @transform_15(%arg0: i32, %arg1: i32) -> (i32, i32) {
    %c0_i32 = arith.constant 0 : i32
    %c0_i32_0 = arith.constant 0 : i32
    %c0_i32_1 = arith.constant 0 : i32
    return %c0_i32, %c0_i32_0 : i32, i32
  }
  func.func @transform_16(%arg0: i32, %arg1: i32) -> (i32, i32, i32) {
    %c0_i32 = arith.constant 0 : i32
    %c0_i32_0 = arith.constant 0 : i32
    return %arg0, %arg1, %c0_i32 : i32, i32, i32
  }
}

</mosaic_0001>

<llo_original>
// kernel: tpu_custom_call.1
$region0: #{tpu_custom_call.1}
  #allocation0 [shape = 'u32[]', space=smem, size = 0x4, offset = 0x4, fixed_abs, tag = 'smem constant byte address 0x4 - core index']
  #allocation1 [shape = 'u32[144,128]{1,0:T(1,128)}', space=vmem, size = 0x12000, scoped, tag = 'internal scratch']
  #allocation2 [shape = 'f32[40,64]{1,0:T(8,128)}', space=vmem, size = 0x5000, scoped, tag = 'scratch operand']
  %s0 = inlined_call_operand.vmem [shape: f32[2,72,128], index: 0, kind: input, shape index: {}]
  %s1 = inlined_call_operand.hbm [shape: f32[2,72,128], index: 1, kind: input, shape index: {}]
  %s2 = inlined_call_operand.vmem [shape: f32[2,72,1], index: 2, kind: input, shape index: {}]
  %s3 = inlined_call_operand.vmem [shape: f32[2,72,1], index: 3, kind: input, shape index: {}]
  %s4 = inlined_call_operand.vmem [shape: f32[1,128], index: 4, kind: input, shape index: {}]
  %s5 = inlined_call_operand.hbm [shape: f32[1,128], index: 5, kind: input, shape index: {}]
  %s6 = inlined_call_operand.vmem [shape: f32[128,64], index: 6, kind: input, shape index: {}]
  %s7 = inlined_call_operand.hbm [shape: f32[1,64], index: 7, kind: input, shape index: {}]
  %s8 = inlined_call_operand.hbm [shape: f32[1,64], index: 8, kind: input, shape index: {}]
  %s9 = inlined_call_operand.hbm [shape: f32[1,64], index: 9, kind: input, shape index: {}]
  %s10 = inlined_call_operand.vmem [shape: f32[5,64,64], index: 10, kind: input, shape index: {}]
  %s11 = inlined_call_operand.hbm [shape: f32[1,64], index: 11, kind: input, shape index: {}]
  %s12 = inlined_call_operand.hbm [shape: f32[1,64], index: 12, kind: input, shape index: {}]
  %s13 = inlined_call_operand.hbm [shape: f32[1,64], index: 13, kind: input, shape index: {}]
  %s14 = inlined_call_operand.vmem [shape: f32[64,128], index: 14, kind: input, shape index: {}]
  %s15 = inlined_call_operand.vmem [shape: f32[1,128], index: 15, kind: input, shape index: {}]
  %s16 = inlined_call_operand.hbm [shape: f32[2,64,128], index: 16, kind: output, shape index: {}]
  %s17 = sld [smem:[#allocation0]]
  $region129: #{tpu_custom_call.1} parent=0
    _
  %s19 = ssub.s32 1, %s17
  %s20 = scalar_select 0, %s19, %s17
  $region1: #{tpu_custom_call.1} parent=0
    #allocation3 [shape = 'u8[8192]{0}', space=vmem, size = 0x2000, scoped, tag = 'input window, operand 1']
    #allocation4 [shape = 's32[2]{0}', space=sflag, size = 0x8, scoped, tag = 'scoped memory for tpu_custom_call.1']
    #allocation5 [shape = 's32[2]{0}', space=sflag, size = 0x8, scoped, tag = 'scoped memory for tpu_custom_call.1']
    #allocation6 [shape = 'u8[512]{0}', space=vmem, size = 0x400, scoped, tag = 'input window, operand 5, single buffered']
    #allocation7 [shape = 's32[1]{0}', space=sflag, size = 0x4, scoped, tag = 'scoped memory for tpu_custom_call.1']
    #allocation8 [shape = 'u8[512]{0}', space=vmem, size = 0x400, scoped, tag = 'input window, operand 7, single buffered']
    #allocation9 [shape = 'u8[512]{0}', space=vmem, size = 0x400, scoped, tag = 'input window, operand 8, single buffered']
    #allocation10 [shape = 's32[1]{0}', space=sflag, size = 0x4, scoped, tag = 'scoped memory for tpu_custom_call.1']
    #allocation11 [shape = 'u8[512]{0}', space=vmem, size = 0x400, scoped, tag = 'input window, operand 9, single buffered']
    #allocation12 [shape = 'u8[512]{0}', space=vmem, size = 0x400, scoped, tag = 'input window, operand 11, single buffered']
    #allocation13 [shape = 's32[1]{0}', space=sflag, size = 0x4, scoped, tag = 'scoped memory for tpu_custom_call.1']
    #allocation14 [shape = 'u8[512]{0}', space=vmem, size = 0x400, scoped, tag = 'input window, operand 12, single buffered']
    #allocation15 [shape = 'u8[512]{0}', space=vmem, size = 0x400, scoped, tag = 'input window, operand 13, single buffered']
    #allocation16 [shape = 's32[1]{0}', space=sflag, size = 0x4, scoped, tag = 'scoped memory for tpu_custom_call.1']
    #allocation17 [shape = 'u8[32768]{0}', space=vmem, size = 0x8000, scoped, tag = 'output window, operand 0']
    %21 = vsyncpa [#allocation4], 0
    %s22 = scalar_lea.sflag [#allocation4], 1
    %23 = vsyncpa %s22, 0
    %24 = vsyncpa [#allocation7], 0
    %25 = vsyncpa [#allocation10], 0
    %26 = vsyncpa [#allocation13], 0
    %27 = vsyncpa [#allocation16], 0
    %28 = vsyncpa [#allocation5], 0
    %s29 = scalar_lea.sflag [#allocation5], 1
    %30 = vsyncpa %s29, 0
    loop: start=0, step=1, limit=6
    $region2: #{tpu_custom_call.1} parent=1 // loop_pre_header
      _
    $region3: #{tpu_custom_call.1} parent=1 // loop_header
      %s32 = sphi 0, %s36
      %p33 = scmp.ge.s32.totalorder %s32, 6
      %s39 = sphi 0, %s51
      %s40 = sphi 0, %s47
      %s41 = sphi 0, %s39
      %s42 = sphi 0, %s40
      %s43 = sphi 0, %s41
      %s44 = sphi 0, %s42
      %s56 = sphi 0, %s58
      %s59 = sphi 0, %s56
      %s60 = sphi 0, %s59
      %s76 = sphi 0, %s60
      %s88 = sphi 0, %s90
      %s91 = sphi 0, %s88
      %s92 = sphi 0, %s91
      %s108 = sphi 0, %s92
      %s116 = sphi 0, %s118
      %s119 = sphi 0, %s116
      %s120 = sphi 0, %s119
      %s136 = sphi 0, %s120
      %s148 = sphi 0, %s150
      %s151 = sphi 0, %s148
      %s152 = sphi 0, %s151
      %s168 = sphi 0, %s152
      %s172 = sphi 0, %s172
      %s174 = sphi 0, %s172
      %s175 = sphi 0, %s174
      %s189 = sphi 0, %s175
      %s193 = sphi 0, %s193
      %s195 = sphi 0, %s193
      %s196 = sphi 0, %s195
      %s210 = sphi 0, %s196
      %s214 = sphi 0, %s214
      %s216 = sphi 0, %s214
      %s217 = sphi 0, %s216
      %s231 = sphi 0, %s217
      %s235 = sphi 0, %s235
      %s237 = sphi 0, %s235
      %s238 = sphi 0, %s237
      %s252 = sphi 0, %s238
      %s256 = sphi 0, %s256
      %s258 = sphi 0, %s256
      %s259 = sphi 0, %s258
      %s273 = sphi 0, %s259
      %s277 = sphi 0, %s277
      %s279 = sphi 0, %s277
      %s280 = sphi 0, %s279
      %s294 = sphi 0, %s280
      %s298 = sphi 0, %s298
      %s300 = sphi 0, %s298
      %s301 = sphi 0, %s300
      %s315 = sphi 0, %s301
      %s319 = sphi 0, %s319
      %s321 = sphi 0, %s319
      %s322 = sphi 0, %s321
      %s336 = sphi 0, %s322
      %s340 = sphi 0, %s340
      %s342 = sphi 0, %s340
      %s343 = sphi 0, %s342
      %s357 = sphi 0, %s343
      %s361 = sphi 0, %s361
      %s363 = sphi 0, %s361
      %s364 = sphi 0, %s363
      %s378 = sphi 0, %s364
      %s382 = sphi 0, %s382
      %s384 = sphi 0, %s382
      %s385 = sphi 0, %s384
      %s399 = sphi 0, %s385
      %s403 = sphi 0, %s403
      %s405 = sphi 0, %s403
      %s406 = sphi 0, %s405
      %s420 = sphi 0, %s406
      %s428 = sphi 0, %s430
      %s431 = sphi 0, %s428
      %s432 = sphi 0, %s431
      %s448 = sphi 0, %s432
    $region4: #{tpu_custom_call.1} parent=1 // loop_header_branch
      %35 = sbr.rel (%p33) target = $region8
    $region5: #{tpu_custom_call.1} parent=1 // loop_body
      %s37 = ssub.s32 %s32, 1
      %s38 = ssub.s32 %s32, 2
      %s45 = sadd.s32 1, %s40
      %p46 = scmp.ge.s32.totalorder %s45, 2
      %s47 = scalar_select %p46, 0, %s45
      %s48 = sadd.s32 1, %s39
      %s49 = scalar_select %p46, %s48, %s39
      %p50 = scmp.ge.s32.totalorder %s49, 2
      %s51 = scalar_select %p50, 0, %s49
      %s52 = ssub.s32 %s39, %s51
      %s53 = ssub.s32 %s40, %s47
      %s54 = sor.u32 %s52, %s53
      %p55 = scmp.eq.s32.totalorder %s54, 0
      %s57 = sadd.s32 %s56, 1
      %s58 = scalar_select %p55, %s56, %s57
      %p61 = pneg %p55
      %p62 = scmp.eq.s32.totalorder %s32, 3
      %p63 = por %p61, %p62
      %p64 = scmp.ne.s32.totalorder %s56, %s59
      %p65 = scmp.eq.s32.totalorder %s32, 0
      %p66 = por %p64, %p65
      %p67 = scmp.ne.s32.totalorder %s56, %s59
      %p68 = scmp.eq.s32.totalorder %s37, 3
      %p69 = por %p67, %p68
      %p70 = scmp.ne.s32.totalorder %s59, %s60
      %p71 = scmp.eq.s32.totalorder %s37, 0
      %p72 = por %p70, %p71
      %p73 = scmp.ne.s32.totalorder %s59, %s60
      %p74 = scmp.eq.s32.totalorder %s38, 3
      %p75 = por %p73, %p74
      %p77 = scmp.ne.s32.totalorder %s60, %s76
      %p78 = scmp.eq.s32.totalorder %s38, 0
      %p79 = por %p77, %p78
      %s80 = sadd.s32 %s40, 1
      %s81 = smul.u32 %s80, 4
      %s82 = sadd.s32 %s47, 1
      %s83 = smul.u32 %s82, 4
      %s84 = ssub.s32 %s39, %s51
      %s85 = ssub.s32 %s81, %s83
      %s86 = sor.u32 %s84, %s85
      %p87 = scmp.eq.s32.totalorder %s86, 0
      %s89 = sadd.s32 %s88, 1
      %s90 = scalar_select %p87, %s88, %s89
      %p93 = pneg %p87
      %p94 = scmp.eq.s32.totalorder %s32, 3
      %p95 = por %p93, %p94
      %p96 = scmp.ne.s32.totalorder %s88, %s91
      %p97 = scmp.eq.s32.totalorder %s32, 0
      %p98 = por %p96, %p97
      %p99 = scmp.ne.s32.totalorder %s88, %s91
      %p100 = scmp.eq.s32.totalorder %s37, 3
      %p101 = por %p99, %p100
      %p102 = scmp.ne.s32.totalorder %s91, %s92
      %p103 = scmp.eq.s32.totalorder %s37, 0
      %p104 = por %p102, %p103
      %p105 = scmp.ne.s32.totalorder %s91, %s92
      %p106 = scmp.eq.s32.totalorder %s38, 3
      %p107 = por %p105, %p106
      %p109 = scmp.ne.s32.totalorder %s92, %s108
      %p110 = scmp.eq.s32.totalorder %s38, 0
      %p111 = por %p109, %p110
      %s112 = ssub.s32 %s39, %s51
      %s113 = ssub.s32 %s40, %s47
      %s114 = sor.u32 %s112, %s113
      %p115 = scmp.eq.s32.totalorder %s114, 0
      %s117 = sadd.s32 %s116, 1
      %s118 = scalar_select %p115, %s116, %s117
      %p121 = pneg %p115
      %p122 = scmp.eq.s32.totalorder %s32, 3
      %p123 = por %p121, %p122
      %p124 = scmp.ne.s32.totalorder %s116, %s119
      %p125 = scmp.eq.s32.totalorder %s32, 0
      %p126 = por %p124, %p125
      %p127 = scmp.ne.s32.totalorder %s116, %s119
      %p128 = scmp.eq.s32.totalorder %s37, 3
      %p129 = por %p127, %p128
      %p130 = scmp.ne.s32.totalorder %s119, %s120
      %p131 = scmp.eq.s32.totalorder %s37, 0
      %p132 = por %p130, %p131
      %p133 = scmp.ne.s32.totalorder %s119, %s120
      %p134 = scmp.eq.s32.totalorder %s38, 3
      %p135 = por %p133, %p134
      %p137 = scmp.ne.s32.totalorder %s120, %s136
      %p138 = scmp.eq.s32.totalorder %s38, 0
      %p139 = por %p137, %p138
      %s140 = sadd.s32 %s40, 1
      %s141 = smul.u32 %s140, 4
      %s142 = sadd.s32 %s47, 1
      %s143 = smul.u32 %s142, 4
      %s144 = ssub.s32 %s39, %s51
      %s145 = ssub.s32 %s141, %s143
      %s146 = sor.u32 %s144, %s145
      %p147 = scmp.eq.s32.totalorder %s146, 0
      %s149 = sadd.s32 %s148, 1
      %s150 = scalar_select %p147, %s148, %s149
      %p153 = pneg %p147
      %p154 = scmp.eq.s32.totalorder %s32, 3
      %p155 = por %p153, %p154
      %p156 = scmp.ne.s32.totalorder %s148, %s151
      %p157 = scmp.eq.s32.totalorder %s32, 0
      %p158 = por %p156, %p157
      %p159 = scmp.ne.s32.totalorder %s148, %s151
      %p160 = scmp.eq.s32.totalorder %s37, 3
      %p161 = por %p159, %p160
      %p162 = scmp.ne.s32.totalorder %s151, %s152
      %p163 = scmp.eq.s32.totalorder %s37, 0
      %p164 = por %p162, %p163
      %p165 = scmp.ne.s32.totalorder %s151, %s152
      %p166 = scmp.eq.s32.totalorder %s38, 3
      %p167 = por %p165, %p166
      %p169 = scmp.ne.s32.totalorder %s152, %s168
      %p170 = scmp.eq.s32.totalorder %s38, 0
      %p171 = por %p169, %p170
      %s173 = sadd.s32 %s172, 1
      %p176 = scmp.eq.s32.totalorder %s32, 3
      %p177 = scmp.ne.s32.totalorder %s172, %s174
      %p178 = scmp.eq.s32.totalorder %s32, 0
      %p179 = por %p177, %p178
      %p180 = scmp.ne.s32.totalorder %s172, %s174
      %p181 = scmp.eq.s32.totalorder %s37, 3
      %p182 = por %p180, %p181
      %p183 = scmp.ne.s32.totalorder %s174, %s175
      %p184 = scmp.eq.s32.totalorder %s37, 0
      %p185 = por %p183, %p184
      %p186 = scmp.ne.s32.totalorder %s174, %s175
      %p187 = scmp.eq.s32.totalorder %s38, 3
      %p188 = por %p186, %p187
      %p190 = scmp.ne.s32.totalorder %s175, %s189
      %p191 = scmp.eq.s32.totalorder %s38, 0
      %p192 = por %p190, %p191
      %s194 = sadd.s32 %s193, 1
      %p197 = scmp.eq.s32.totalorder %s32, 3
      %p198 = scmp.ne.s32.totalorder %s193, %s195
      %p199 = scmp.eq.s32.totalorder %s32, 0
      %p200 = por %p198, %p199
      %p201 = scmp.ne.s32.totalorder %s193, %s195
      %p202 = scmp.eq.s32.totalorder %s37, 3
      %p203 = por %p201, %p202
      %p204 = scmp.ne.s32.totalorder %s195, %s196
      %p205 = scmp.eq.s32.totalorder %s37, 0
      %p206 = por %p204, %p205
      %p207 = scmp.ne.s32.totalorder %s195, %s196
      %p208 = scmp.eq.s32.totalorder %s38, 3
      %p209 = por %p207, %p208
      %p211 = scmp.ne.s32.totalorder %s196, %s210
      %p212 = scmp.eq.s32.totalorder %s38, 0
      %p213 = por %p211, %p212
      %s215 = sadd.s32 %s214, 1
      %p218 = scmp.eq.s32.totalorder %s32, 3
      %p219 = scmp.ne.s32.totalorder %s214, %s216
      %p220 = scmp.eq.s32.totalorder %s32, 0
      %p221 = por %p219, %p220
      %p222 = scmp.ne.s32.totalorder %s214, %s216
      %p223 = scmp.eq.s32.totalorder %s37, 3
      %p224 = por %p222, %p223
      %p225 = scmp.ne.s32.totalorder %s216, %s217
      %p226 = scmp.eq.s32.totalorder %s37, 0
      %p227 = por %p225, %p226
      %p228 = scmp.ne.s32.totalorder %s216, %s217
      %p229 = scmp.eq.s32.totalorder %s38, 3
      %p230 = por %p228, %p229
      %p232 = scmp.ne.s32.totalorder %s217, %s231
      %p233 = scmp.eq.s32.totalorder %s38, 0
      %p234 = por %p232, %p233
      %s236 = sadd.s32 %s235, 1
      %p239 = scmp.eq.s32.totalorder %s32, 3
      %p240 = scmp.ne.s32.totalorder %s235, %s237
      %p241 = scmp.eq.s32.totalorder %s32, 0
      %p242 = por %p240, %p241
      %p243 = scmp.ne.s32.totalorder %s235, %s237
      %p244 = scmp.eq.s32.totalorder %s37, 3
      %p245 = por %p243, %p244
      %p246 = scmp.ne.s32.totalorder %s237, %s238
      %p247 = scmp.eq.s32.totalorder %s37, 0
      %p248 = por %p246, %p247
      %p249 = scmp.ne.s32.totalorder %s237, %s238
      %p250 = scmp.eq.s32.totalorder %s38, 3
      %p251 = por %p249, %p250
      %p253 = scmp.ne.s32.totalorder %s238, %s252
      %p254 = scmp.eq.s32.totalorder %s38, 0
      %p255 = por %p253, %p254
      %s257 = sadd.s32 %s256, 1
      %p260 = scmp.eq.s32.totalorder %s32, 3
      %p261 = scmp.ne.s32.totalorder %s256, %s258
      %p262 = scmp.eq.s32.totalorder %s32, 0
      %p263 = por %p261, %p262
      %p264 = scmp.ne.s32.totalorder %s256, %s258
      %p265 = scmp.eq.s32.totalorder %s37, 3
      %p266 = por %p264, %p265
      %p267 = scmp.ne.s32.totalorder %s258, %s259
      %p268 = scmp.eq.s32.totalorder %s37, 0
      %p269 = por %p267, %p268
      %p270 = scmp.ne.s32.totalorder %s258, %s259
      %p271 = scmp.eq.s32.totalorder %s38, 3
      %p272 = por %p270, %p271
      %p274 = scmp.ne.s32.totalorder %s259, %s273
      %p275 = scmp.eq.s32.totalorder %s38, 0
      %p276 = por %p274, %p275
      %s278 = sadd.s32 %s277, 1
      %p281 = scmp.eq.s32.totalorder %s32, 3
      %p282 = scmp.ne.s32.totalorder %s277, %s279
      %p283 = scmp.eq.s32.totalorder %s32, 0
      %p284 = por %p282, %p283
      %p285 = scmp.ne.s32.totalorder %s277, %s279
      %p286 = scmp.eq.s32.totalorder %s37, 3
      %p287 = por %p285, %p286
      %p288 = scmp.ne.s32.totalorder %s279, %s280
      %p289 = scmp.eq.s32.totalorder %s37, 0
      %p290 = por %p288, %p289
      %p291 = scmp.ne.s32.totalorder %s279, %s280
      %p292 = scmp.eq.s32.totalorder %s38, 3
      %p293 = por %p291, %p292
      %p295 = scmp.ne.s32.totalorder %s280, %s294
      %p296 = scmp.eq.s32.totalorder %s38, 0
      %p297 = por %p295, %p296
      %s299 = sadd.s32 %s298, 1
      %p302 = scmp.eq.s32.totalorder %s32, 3
      %p303 = scmp.ne.s32.totalorder %s298, %s300
      %p304 = scmp.eq.s32.totalorder %s32, 0
      %p305 = por %p303, %p304
      %p306 = scmp.ne.s32.totalorder %s298, %s300
      %p307 = scmp.eq.s32.totalorder %s37, 3
      %p308 = por %p306, %p307
      %p309 = scmp.ne.s32.totalorder %s300, %s301
      %p310 = scmp.eq.s32.totalorder %s37, 0
      %p311 = por %p309, %p310
      %p312 = scmp.ne.s32.totalorder %s300, %s301
      %p313 = scmp.eq.s32.totalorder %s38, 3
      %p314 = por %p312, %p313
      %p316 = scmp.ne.s32.totalorder %s301, %s315
      %p317 = scmp.eq.s32.totalorder %s38, 0
      %p318 = por %p316, %p317
      %s320 = sadd.s32 %s319, 1
      %p323 = scmp.eq.s32.totalorder %s32, 3
      %p324 = scmp.ne.s32.totalorder %s319, %s321
      %p325 = scmp.eq.s32.totalorder %s32, 0
      %p326 = por %p324, %p325
      %p327 = scmp.ne.s32.totalorder %s319, %s321
      %p328 = scmp.eq.s32.totalorder %s37, 3
      %p329 = por %p327, %p328
      %p330 = scmp.ne.s32.totalorder %s321, %s322
      %p331 = scmp.eq.s32.totalorder %s37, 0
      %p332 = por %p330, %p331
      %p333 = scmp.ne.s32.totalorder %s321, %s322
      %p334 = scmp.eq.s32.totalorder %s38, 3
      %p335 = por %p333, %p334
      %p337 = scmp.ne.s32.totalorder %s322, %s336
      %p338 = scmp.eq.s32.totalorder %s38, 0
      %p339 = por %p337, %p338
      %s341 = sadd.s32 %s340, 1
      %p344 = scmp.eq.s32.totalorder %s32, 3
      %p345 = scmp.ne.s32.totalorder %s340, %s342
      %p346 = scmp.eq.s32.totalorder %s32, 0
      %p347 = por %p345, %p346
      %p348 = scmp.ne.s32.totalorder %s340, %s342
      %p349 = scmp.eq.s32.totalorder %s37, 3
      %p350 = por %p348, %p349
      %p351 = scmp.ne.s32.totalorder %s342, %s343
      %p352 = scmp.eq.s32.totalorder %s37, 0
      %p353 = por %p351, %p352
      %p354 = scmp.ne.s32.totalorder %s342, %s343
      %p355 = scmp.eq.s32.totalorder %s38, 3
      %p356 = por %p354, %p355
      %p358 = scmp.ne.s32.totalorder %s343, %s357
      %p359 = scmp.eq.s32.totalorder %s38, 0
      %p360 = por %p358, %p359
      %s362 = sadd.s32 %s361, 1
      %p365 = scmp.eq.s32.totalorder %s32, 3
      %p366 = scmp.ne.s32.totalorder %s361, %s363
      %p367 = scmp.eq.s32.totalorder %s32, 0
      %p368 = por %p366, %p367
      %p369 = scmp.ne.s32.totalorder %s361, %s363
      %p370 = scmp.eq.s32.totalorder %s37, 3
      %p371 = por %p369, %p370
      %p372 = scmp.ne.s32.totalorder %s363, %s364
      %p373 = scmp.eq.s32.totalorder %s37, 0
      %p374 = por %p372, %p373
      %p375 = scmp.ne.s32.totalorder %s363, %s364
      %p376 = scmp.eq.s32.totalorder %s38, 3
      %p377 = por %p375, %p376
      %p379 = scmp.ne.s32.totalorder %s364, %s378
      %p380 = scmp.eq.s32.totalorder %s38, 0
      %p381 = por %p379, %p380
      %s383 = sadd.s32 %s382, 1
      %p386 = scmp.eq.s32.totalorder %s32, 3
      %p387 = scmp.ne.s32.totalorder %s382, %s384
      %p388 = scmp.eq.s32.totalorder %s32, 0
      %p389 = por %p387, %p388
      %p390 = scmp.ne.s32.totalorder %s382, %s384
      %p391 = scmp.eq.s32.totalorder %s37, 3
      %p392 = por %p390, %p391
      %p393 = scmp.ne.s32.totalorder %s384, %s385
      %p394 = scmp.eq.s32.totalorder %s37, 0
      %p395 = por %p393, %p394
      %p396 = scmp.ne.s32.totalorder %s384, %s385
      %p397 = scmp.eq.s32.totalorder %s38, 3
      %p398 = por %p396, %p397
      %p400 = scmp.ne.s32.totalorder %s385, %s399
      %p401 = scmp.eq.s32.totalorder %s38, 0
      %p402 = por %p400, %p401
      %s404 = sadd.s32 %s403, 1
      %p407 = scmp.eq.s32.totalorder %s32, 3
      %p408 = scmp.ne.s32.totalorder %s403, %s405
      %p409 = scmp.eq.s32.totalorder %s32, 0
      %p410 = por %p408, %p409
      %p411 = scmp.ne.s32.totalorder %s403, %s405
      %p412 = scmp.eq.s32.totalorder %s37, 3
      %p413 = por %p411, %p412
      %p414 = scmp.ne.s32.totalorder %s405, %s406
      %p415 = scmp.eq.s32.totalorder %s37, 0
      %p416 = por %p414, %p415
      %p417 = scmp.ne.s32.totalorder %s405, %s406
      %p418 = scmp.eq.s32.totalorder %s38, 3
      %p419 = por %p417, %p418
      %p421 = scmp.ne.s32.totalorder %s406, %s420
      %p422 = scmp.eq.s32.totalorder %s38, 0
      %p423 = por %p421, %p422
      %s424 = ssub.s32 %s39, %s51
      %s425 = ssub.s32 %s40, %s47
      %s426 = sor.u32 %s424, %s425
      %p427 = scmp.eq.s32.totalorder %s426, 0
      %s429 = sadd.s32 %s428, 1
      %s430 = scalar_select %p427, %s428, %s429
      %p433 = pneg %p427
      %p434 = scmp.eq.s32.totalorder %s32, 3
      %p435 = por %p433, %p434
      %p436 = scmp.ne.s32.totalorder %s428, %s431
      %p437 = scmp.eq.s32.totalorder %s32, 0
      %p438 = por %p436, %p437
      %p439 = scmp.ne.s32.totalorder %s428, %s431
      %p440 = scmp.eq.s32.totalorder %s37, 3
      %p441 = por %p439, %p440
      %p442 = scmp.ne.s32.totalorder %s431, %s432
      %p443 = scmp.eq.s32.totalorder %s37, 0
      %p444 = por %p442, %p443
      %p445 = scmp.ne.s32.totalorder %s431, %s432
      %p446 = scmp.eq.s32.totalorder %s38, 3
      %p447 = por %p445, %p446
      %p449 = scmp.ne.s32.totalorder %s432, %s448
      %p450 = scmp.eq.s32.totalorder %s38, 0
      %p451 = por %p449, %p450
      %p452 = scmp.le.s32.totalorder 1, %s32
      %p453 = scmp.lt.s32.totalorder %s32, 5
      %p454 = pnand %p452, %p453
      %p455 = pneg %p454
      // Predicated region
      $region9: #{tpu_custom_call.1} parent=5 // pred_check
        _
      $region10: #{tpu_custom_call.1} parent=5 // pred_check_branch
        %457 = sbr.rel (%p454) target = $region12
      $region11: #{tpu_custom_call.1} parent=5 // pred_region
        %s458 = ssub.s32 %s32, 1
        // Predicated region
        $region13: #{tpu_custom_call.1} parent=11 // pred_check
          %p459 = pneg %p185
        $region14: #{tpu_custom_call.1} parent=11 // pred_check_branch
          %461 = sbr.rel (%p459) target = $region16
        $region15: #{tpu_custom_call.1} parent=11 // pred_region
          _
        $region16: #{tpu_custom_call.1} parent=11 // pred_fallthru
          _
        // Predicated region
        $region17: #{tpu_custom_call.1} parent=11 // pred_check
          %p462 = pneg %p206
        $region18: #{tpu_custom_call.1} parent=11 // pred_check_branch
          %464 = sbr.rel (%p462) target = $region20
        $region19: #{tpu_custom_call.1} parent=11 // pred_region
          %s466 = ssub.s32 16, 16
          %467 = vsyncadd [#allocation7], %s466
          %s469 = sshll.u32 [#allocation6], 4
          %s470 = int_to_ptr.vmem [resolvable:$true] %s469
          %472 = dma.hbm_to_vmem [thread:$0]  %s5, 16, %s470, [#allocation7]
        $region20: #{tpu_custom_call.1} parent=11 // pred_fallthru
          _
        // Predicated region
        $region21: #{tpu_custom_call.1} parent=11 // pred_check
          %p473 = pneg %p227
        $region22: #{tpu_custom_call.1} parent=11 // pred_check_branch
          %475 = sbr.rel (%p473) target = $region24
        $region23: #{tpu_custom_call.1} parent=11 // pred_region
          _
        $region24: #{tpu_custom_call.1} parent=11 // pred_fallthru
          _
        // Predicated region
        $region25: #{tpu_custom_call.1} parent=11 // pred_check
          %p476 = pneg %p248
        $region26: #{tpu_custom_call.1} parent=11 // pred_check_branch
          %478 = sbr.rel (%p476) target = $region28
        $region27: #{tpu_custom_call.1} parent=11 // pred_region
          %s480 = ssub.s32 16, 16
          %481 = vsyncadd [#allocation7], %s480
          %s483 = sshll.u32 [#allocation8], 4
          %s484 = int_to_ptr.vmem [resolvable:$true] %s483
          %486 = dma.hbm_to_vmem [thread:$0]  %s7, 16, %s484, [#allocation7]
        $region28: #{tpu_custom_call.1} parent=11 // pred_fallthru
          _
        // Predicated region
        $region29: #{tpu_custom_call.1} parent=11 // pred_check
          %p487 = pneg %p269
        $region30: #{tpu_custom_call.1} parent=11 // pred_check_branch
          %489 = sbr.rel (%p487) target = $region32
        $region31: #{tpu_custom_call.1} parent=11 // pred_region
          %s491 = ssub.s32 16, 16
          %492 = vsyncadd [#allocation10], %s491
          %s494 = sshll.u32 [#allocation9], 4
          %s495 = int_to_ptr.vmem [resolvable:$true] %s494
          %497 = dma.hbm_to_vmem [thread:$0]  %s8, 16, %s495, [#allocation10]
        $region32: #{tpu_custom_call.1} parent=11 // pred_fallthru
          _
        // Predicated region
        $region33: #{tpu_custom_call.1} parent=11 // pred_check
          %p498 = pneg %p290
        $region34: #{tpu_custom_call.1} parent=11 // pred_check_branch
          %500 = sbr.rel (%p498) target = $region36
        $region35: #{tpu_custom_call.1} parent=11 // pred_region
          %s502 = ssub.s32 16, 16
          %503 = vsyncadd [#allocation10], %s502
          %s505 = sshll.u32 [#allocation11], 4
          %s506 = int_to_ptr.vmem [resolvable:$true] %s505
          %508 = dma.hbm_to_vmem [thread:$0]  %s9, 16, %s506, [#allocation10]
        $region36: #{tpu_custom_call.1} parent=11 // pred_fallthru
          _
        // Predicated region
        $region37: #{tpu_custom_call.1} parent=11 // pred_check
          %p509 = pneg %p311
        $region38: #{tpu_custom_call.1} parent=11 // pred_check_branch
          %511 = sbr.rel (%p509) target = $region40
        $region39: #{tpu_custom_call.1} parent=11 // pred_region
          _
        $region40: #{tpu_custom_call.1} parent=11 // pred_fallthru
          _
        // Predicated region
        $region41: #{tpu_custom_call.1} parent=11 // pred_check
          %p512 = pneg %p332
        $region42: #{tpu_custom_call.1} parent=11 // pred_check_branch
          %514 = sbr.rel (%p512) target = $region44
        $region43: #{tpu_custom_call.1} parent=11 // pred_region
          %s516 = ssub.s32 16, 16
          %517 = vsyncadd [#allocation13], %s516
          %s519 = sshll.u32 [#allocation12], 4
          %s520 = int_to_ptr.vmem [resolvable:$true] %s519
          %522 = dma.hbm_to_vmem [thread:$0]  %s11, 16, %s520, [#allocation13]
        $region44: #{tpu_custom_call.1} parent=11 // pred_fallthru
          _
        // Predicated region
        $region45: #{tpu_custom_call.1} parent=11 // pred_check
          %p523 = pneg %p353
        $region46: #{tpu_custom_call.1} parent=11 // pred_check_branch
          %525 = sbr.rel (%p523) target = $region48
        $region47: #{tpu_custom_call.1} parent=11 // pred_region
          %s527 = ssub.s32 16, 16
          %528 = vsyncadd [#allocation13], %s527
          %s530 = sshll.u32 [#allocation14], 4
          %s531 = int_to_ptr.vmem [resolvable:$true] %s530
          %533 = dma.hbm_to_vmem [thread:$0]  %s12, 16, %s531, [#allocation13]
        $region48: #{tpu_custom_call.1} parent=11 // pred_fallthru
          _
        // Predicated region
        $region49: #{tpu_custom_call.1} parent=11 // pred_check
          %p534 = pneg %p374
        $region50: #{tpu_custom_call.1} parent=11 // pred_check_branch
          %536 = sbr.rel (%p534) target = $region52
        $region51: #{tpu_custom_call.1} parent=11 // pred_region
          %s538 = ssub.s32 16, 16
          %539 = vsyncadd [#allocation16], %s538
          %s541 = sshll.u32 [#allocation15], 4
          %s542 = int_to_ptr.vmem [resolvable:$true] %s541
          %544 = dma.hbm_to_vmem [thread:$0]  %s13, 16, %s542, [#allocation16]
        $region52: #{tpu_custom_call.1} parent=11 // pred_fallthru
          _
        // Predicated region
        $region53: #{tpu_custom_call.1} parent=11 // pred_check
          %p545 = pneg %p395
        $region54: #{tpu_custom_call.1} parent=11 // pred_check_branch
          %547 = sbr.rel (%p545) target = $region56
        $region55: #{tpu_custom_call.1} parent=11 // pred_region
          _
        $region56: #{tpu_custom_call.1} parent=11 // pred_fallthru
          _
        // Predicated region
        $region57: #{tpu_custom_call.1} parent=11 // pred_check
          %p548 = pneg %p416
        $region58: #{tpu_custom_call.1} parent=11 // pred_check_branch
          %550 = sbr.rel (%p548) target = $region60
        $region59: #{tpu_custom_call.1} parent=11 // pred_region
          _
        $region60: #{tpu_custom_call.1} parent=11 // pred_fallthru
          _
      $region12: #{tpu_custom_call.1} parent=5 // pred_fallthru
        _
      %p551 = scmp.lt.s32.totalorder %s32, 4
      // Predicated region
      $region61: #{tpu_custom_call.1} parent=5 // pred_check
        %p552 = pneg %p551
      $region62: #{tpu_custom_call.1} parent=5 // pred_check_branch
        %554 = sbr.rel (%p552) target = $region64
      $region63: #{tpu_custom_call.1} parent=5 // pred_region
        // Predicated region
        $region65: #{tpu_custom_call.1} parent=63 // pred_check
          %p555 = pneg %p66
        $region66: #{tpu_custom_call.1} parent=63 // pred_check_branch
          %557 = sbr.rel (%p555) target = $region68
        $region67: #{tpu_custom_call.1} parent=63 // pred_region
          %s558 = smul.u32 4, %s40
          %s559 = ssub.s32 9, %s558
          %p560 = scmp.lt.s32.totalorder %s559, 4
          %s561 = scalar_select %p560, %s559, 4
          %s562 = smul.u32 128, %s561
          %p563 = scmp.lt.s32.totalorder %s39, 1
          %s564 = scalar_select %p563, %s39, 1
          %p565 = scmp.lt.s32.totalorder %s558, 8
          %s566 = scalar_select %p565, %s558, 8
          %s567 = smul.addr %s564, 9
          %s568 = sadd.s32 %s566, %s567
          %s569 = smul.addr %s568, 8
          %s570 = scalar_lea.vmem %s0, %s569
          %s571 = smul.u32 4, %s40
          %s572 = ssub.s32 9, %s571
          %p573 = scmp.lt.s32.totalorder %s572, 4
          %s574 = scalar_select %p573, %s572, 4
          %s575 = smul.u32 128, %s574
        $region68: #{tpu_custom_call.1} parent=63 // pred_fallthru
          _
        // Predicated region
        $region69: #{tpu_custom_call.1} parent=63 // pred_check
          %p576 = pneg %p98
        $region70: #{tpu_custom_call.1} parent=63 // pred_check_branch
          %578 = sbr.rel (%p576) target = $region72
        $region71: #{tpu_custom_call.1} parent=63 // pred_region
          %s579 = sand.u32 %s88, 1
          %s580 = scalar_lea.sflag [#allocation4], %s579
          %s581 = sand.u32 %s88, 1
          %s582 = smul.addr %s581, 8
          %s583 = scalar_lea.vmem [#allocation3], %s582
          %s584 = sadd.s32 %s40, 1
          %s585 = smul.u32 %s584, 4
          %s587 = ssub.s32 128, 128
          %588 = vsyncadd %s580, %s587
          %s589 = smul.addr %s39, 9
          %s590 = sadd.s32 %s585, %s589
          %s591 = smul.addr %s590, 128
          %s592 = scalar_lea.hbm %s1, %s591
          %s594 = sshll.u32 %s583, 4
          %s595 = int_to_ptr.vmem [resolvable:$true] %s594
          %597 = dma.hbm_to_vmem [thread:$0]  %s592, 128, %s595, %s580
        $region72: #{tpu_custom_call.1} parent=63 // pred_fallthru
          _
        // Predicated region
        $region73: #{tpu_custom_call.1} parent=63 // pred_check
          %p598 = pneg %p126
        $region74: #{tpu_custom_call.1} parent=63 // pred_check_branch
          %600 = sbr.rel (%p598) target = $region76
        $region75: #{tpu_custom_call.1} parent=63 // pred_region
          %s601 = smul.u32 4, %s40
          %s602 = ssub.s32 9, %s601
          %p603 = scmp.lt.s32.totalorder %s602, 4
          %s604 = scalar_select %p603, %s602, 4
          %s605 = smul.u32 128, %s604
          %p606 = scmp.lt.s32.totalorder %s39, 1
          %s607 = scalar_select %p606, %s39, 1
          %p608 = scmp.lt.s32.totalorder %s601, 8
          %s609 = scalar_select %p608, %s601, 8
          %s610 = smul.addr %s607, 9
          %s611 = sadd.s32 %s609, %s610
          %s612 = smul.addr %s611, 8
          %s613 = scalar_lea.vmem %s2, %s612
          %s614 = smul.u32 4, %s40
          %s615 = ssub.s32 9, %s614
          %p616 = scmp.lt.s32.totalorder %s615, 4
          %s617 = scalar_select %p616, %s615, 4
          %s618 = smul.u32 128, %s617
        $region76: #{tpu_custom_call.1} parent=63 // pred_fallthru
          _
        // Predicated region
        $region77: #{tpu_custom_call.1} parent=63 // pred_check
          %p619 = pneg %p158
        $region78: #{tpu_custom_call.1} parent=63 // pred_check_branch
          %621 = sbr.rel (%p619) target = $region80
        $region79: #{tpu_custom_call.1} parent=63 // pred_region
          %s622 = sadd.s32 %s40, 1
          %s623 = smul.u32 %s622, 4
          %p624 = scmp.lt.s32.totalorder %s39, 1
          %s625 = scalar_select %p624, %s39, 1
          %p626 = scmp.lt.s32.totalorder %s623, 8
          %s627 = scalar_select %p626, %s623, 8
          %s628 = smul.addr %s625, 9
          %s629 = sadd.s32 %s627, %s628
          %s630 = smul.addr %s629, 8
          %s631 = scalar_lea.vmem %s3, %s630
          %s632 = sadd.s32 %s40, 1
          %s633 = smul.u32 %s632, 4
        $region80: #{tpu_custom_call.1} parent=63 // pred_fallthru
          _
      $region64: #{tpu_custom_call.1} parent=5 // pred_fallthru
        _
      %p634 = scmp.le.s32.totalorder 1, %s32
      %p635 = scmp.lt.s32.totalorder %s32, 5
      %p636 = pnand %p634, %p635
      %p637 = pneg %p636
      // Predicated region
      $region81: #{tpu_custom_call.1} parent=5 // pred_check
        _
      $region82: #{tpu_custom_call.1} parent=5 // pred_check_branch
        %639 = sbr.rel (%p636) target = $region84
      $region83: #{tpu_custom_call.1} parent=5 // pred_region
        %s640 = ssub.s32 %s32, 1
        %s641 = sand.u32 %s91, 1
        %s642 = scalar_lea.sflag [#allocation4], %s641
        %s643 = sand.u32 %s91, 1
        %s644 = smul.addr %s643, 8
        %s645 = scalar_lea.vmem [#allocation3], %s644
        // Predicated region
        $region85: #{tpu_custom_call.1} parent=83 // pred_check
          %p646 = pneg %p104
        $region86: #{tpu_custom_call.1} parent=83 // pred_check_branch
          %648 = sbr.rel (%p646) target = $region88
        $region87: #{tpu_custom_call.1} parent=83 // pred_region
          %649 = dma.done %s642, 128
        $region88: #{tpu_custom_call.1} parent=83 // pred_fallthru
          _
        // Predicated region
        $region89: #{tpu_custom_call.1} parent=83 // pred_check
          %p650 = pneg %p206
        $region90: #{tpu_custom_call.1} parent=83 // pred_check_branch
          %652 = sbr.rel (%p650) target = $region92
        $region91: #{tpu_custom_call.1} parent=83 // pred_region
          %653 = dma.done [#allocation7], 16
        $region92: #{tpu_custom_call.1} parent=83 // pred_fallthru
          _
        // Predicated region
        $region93: #{tpu_custom_call.1} parent=83 // pred_check
          %p654 = pneg %p248
        $region94: #{tpu_custom_call.1} parent=83 // pred_check_branch
          %656 = sbr.rel (%p654) target = $region96
        $region95: #{tpu_custom_call.1} parent=83 // pred_region
          %657 = dma.done [#allocation7], 16
        $region96: #{tpu_custom_call.1} parent=83 // pred_fallthru
          _
        // Predicated region
        $region97: #{tpu_custom_call.1} parent=83 // pred_check
          %p658 = pneg %p269
        $region98: #{tpu_custom_call.1} parent=83 // pred_check_branch
          %660 = sbr.rel (%p658) target = $region100
        $region99: #{tpu_custom_call.1} parent=83 // pred_region
          %661 = dma.done [#allocation10], 16
        $region100: #{tpu_custom_call.1} parent=83 // pred_fallthru
          _
        // Predicated region
        $region101: #{tpu_custom_call.1} parent=83 // pred_check
          %p662 = pneg %p290
        $region102: #{tpu_custom_call.1} parent=83 // pred_check_branch
          %664 = sbr.rel (%p662) target = $region104
        $region103: #{tpu_custom_call.1} parent=83 // pred_region
          %665 = dma.done [#allocation10], 16
        $region104: #{tpu_custom_call.1} parent=83 // pred_fallthru
          _
        // Predicated region
        $region105: #{tpu_custom_call.1} parent=83 // pred_check
          %p666 = pneg %p332
        $region106: #{tpu_custom_call.1} parent=83 // pred_check_branch
          %668 = sbr.rel (%p666) target = $region108
        $region107: #{tpu_custom_call.1} parent=83 // pred_region
          %669 = dma.done [#allocation13], 16
        $region108: #{tpu_custom_call.1} parent=83 // pred_fallthru
          _
        // Predicated region
        $region109: #{tpu_custom_call.1} parent=83 // pred_check
          %p670 = pneg %p353
        $region110: #{tpu_custom_call.1} parent=83 // pred_check_branch
          %672 = sbr.rel (%p670) target = $region112
        $region111: #{tpu_custom_call.1} parent=83 // pred_region
          %673 = dma.done [#allocation13], 16
        $region112: #{tpu_custom_call.1} parent=83 // pred_fallthru
          _
        // Predicated region
        $region113: #{tpu_custom_call.1} parent=83 // pred_check
          %p674 = pneg %p374
        $region114: #{tpu_custom_call.1} parent=83 // pred_check_branch
          %676 = sbr.rel (%p674) target = $region116
        $region115: #{tpu_custom_call.1} parent=83 // pred_region
          %677 = dma.done [#allocation16], 16
        $region116: #{tpu_custom_call.1} parent=83 // pred_fallthru
          _
        %s678 = smul.u32 4, %s42
        %s679 = ssub.s32 9, %s678
        %p680 = scmp.lt.s32.totalorder %s679, 4
        %s681 = scalar_select %p680, %s679, 4
        %s682 = smul.u32 128, %s681
        %p683 = scmp.lt.s32.totalorder %s41, 1
        %s684 = scalar_select %p683, %s41, 1
        %p685 = scmp.lt.s32.totalorder %s678, 8
        %s686 = scalar_select %p685, %s678, 8
        %s687 = smul.addr %s684, 9
        %s688 = sadd.s32 %s686, %s687
        %s689 = smul.addr %s688, 8
        %s690 = scalar_lea.vmem %s0, %s689
        %p691 = pneg %p72
        %p692 = pneg %p69
        %s693 = sand.u32 %s91, 1
        %s694 = scalar_lea.sflag [#allocation4], %s693
        %s695 = sand.u32 %s91, 1
        %s696 = smul.addr %s695, 8
        %s697 = scalar_lea.vmem [#allocation3], %s696
        %p698 = pneg %p104
        %p699 = pneg %p101
        %s700 = smul.u32 4, %s42
        %s701 = ssub.s32 9, %s700
        %p702 = scmp.lt.s32.totalorder %s701, 4
        %s703 = scalar_select %p702, %s701, 4
        %s704 = smul.u32 128, %s703
        %p705 = scmp.lt.s32.totalorder %s41, 1
        %s706 = scalar_select %p705, %s41, 1
        %p707 = scmp.lt.s32.totalorder %s700, 8
        %s708 = scalar_select %p707, %s700, 8
        %s709 = smul.addr %s706, 9
        %s710 = sadd.s32 %s708, %s709
        %s711 = smul.addr %s710, 8
        %s712 = scalar_lea.vmem %s2, %s711
        %p713 = pneg %p132
        %p714 = pneg %p129
        %s715 = sadd.s32 %s42, 1
        %s716 = smul.u32 %s715, 4
        %p717 = scmp.lt.s32.totalorder %s41, 1
        %s718 = scalar_select %p717, %s41, 1
        %p719 = scmp.lt.s32.totalorder %s716, 8
        %s720 = scalar_select %p719, %s716, 8
        %s721 = smul.addr %s718, 9
        %s722 = sadd.s32 %s720, %s721
        %s723 = smul.addr %s722, 8
        %s724 = scalar_lea.vmem %s3, %s723
        %p725 = pneg %p164
        %p726 = pneg %p161
        %p727 = pneg %p185
        %p728 = pneg %p182
        %p729 = pneg %p206
        %p730 = pneg %p203
        %p731 = pneg %p227
        %p732 = pneg %p224
        %p733 = pneg %p248
        %p734 = pneg %p245
        %p735 = pneg %p269
        %p736 = pneg %p266
        %p737 = pneg %p290
        %p738 = pneg %p287
        %p739 = pneg %p311
        %p740 = pneg %p308
        %p741 = pneg %p332
        %p742 = pneg %p329
        %p743 = pneg %p353
        %p744 = pneg %p350
        %p745 = pneg %p374
        %p746 = pneg %p371
        %p747 = pneg %p395
        %p748 = pneg %p392
        %p749 = pneg %p416
        %p750 = pneg %p413
        %p751 = pneg %p444
        %p752 = pneg %p441
        %s753 = sand.u32 %s431, 1
        %s754 = scalar_lea.sflag [#allocation5], %s753
        %s755 = sand.u32 %s431, 1
        %s756 = smul.addr %s755, 32
        %s757 = scalar_lea.vmem [#allocation17], %s756
        %s758 = smul.u32 4, %s42
        %s759 = ssub.s32 9, %s758
        %p760 = scmp.lt.s32.totalorder %s759, 4
        %s761 = scalar_select %p760, %s759, 4
        %s762 = smul.u32 128, %s761
        %p763 = scmp.lt.s32.totalorder %s41, 1
        %s764 = scalar_select %p763, %s41, 1
        %p765 = scmp.lt.s32.totalorder %s758, 8
        %s766 = scalar_select %p765, %s758, 8
        %s767 = smul.addr %s764, 9
        %s768 = sadd.s32 %s766, %s767
        %s769 = smul.addr %s768, 8
        %s770 = scalar_lea.vmem %s0, %s769
        %s771 = smul.u32 4, %s42
        %s772 = ssub.s32 9, %s771
        %p773 = scmp.lt.s32.totalorder %s772, 4
        %s774 = scalar_select %p773, %s772, 4
        %s775 = smul.u32 128, %s774
        %s776 = sadd.s32 %s42, 1
        %s777 = smul.u32 %s776, 4
        %s778 = smul.u32 4, %s42
        %s779 = ssub.s32 9, %s778
        %p780 = scmp.lt.s32.totalorder %s779, 4
        %s781 = scalar_select %p780, %s779, 4
        %s782 = smul.u32 128, %s781
        %p783 = scmp.lt.s32.totalorder %s41, 1
        %s784 = scalar_select %p783, %s41, 1
        %p785 = scmp.lt.s32.totalorder %s778, 8
        %s786 = scalar_select %p785, %s778, 8
        %s787 = smul.addr %s784, 9
        %s788 = sadd.s32 %s786, %s787
        %s789 = smul.addr %s788, 8
        %s790 = scalar_lea.vmem %s2, %s789
        %s791 = smul.u32 4, %s42
        %s792 = ssub.s32 9, %s791
        %p793 = scmp.lt.s32.totalorder %s792, 4
        %s794 = scalar_select %p793, %s792, 4
        %s795 = smul.u32 128, %s794
        %s796 = sadd.s32 %s42, 1
        %s797 = smul.u32 %s796, 4
        %p798 = scmp.lt.s32.totalorder %s41, 1
        %s799 = scalar_select %p798, %s41, 1
        %p800 = scmp.lt.s32.totalorder %s797, 8
        %s801 = scalar_select %p800, %s797, 8
        %s802 = smul.addr %s799, 9
        %s803 = sadd.s32 %s801, %s802
        %s804 = smul.addr %s803, 8
        %s805 = scalar_lea.vmem %s3, %s804
        %s806 = sadd.s32 %s42, 1
        %s807 = smul.u32 %s806, 4
        %s808 = smul.u32 4, %s42
        %v809 = vld [vmem:[%s770] sm:$0xff]
        %v810 = vld [vmem:[%s770 + $0x8] sm:$0xff]
        %v811 = vld [vmem:[%s770 + $0x10] sm:$0xff]
        %v812 = vld [vmem:[%s770 + $0x18] sm:$0xff]
        %v813 = vld [vmem:[%s790] sm:$0xff]
        %v814 = vld [vmem:[%s790 + $0x8] sm:$0xff]
        %v815 = vld [vmem:[%s790 + $0x10] sm:$0xff]
        %v816 = vld [vmem:[%s790 + $0x18] sm:$0xff]
        %v817 = vld [vmem:[%s4] sm:$0x1]
        %v818 = vld [vmem:[#allocation6] sm:$0x1]
        %819 = vadd.xlane.f32.xlu0 %v809
        %v820 = vpop.xlane.xlu0 %819
        %821 = vadd.xlane.f32.xlu0 %v810
        %v822 = vpop.xlane.xlu0 %821
        %823 = vadd.xlane.f32.xlu0 %v811
        %v824 = vpop.xlane.xlu0 %823
        %825 = vadd.xlane.f32.xlu0 %v812
        %v826 = vpop.xlane.xlu0 %825
        %v827 = vrcp.pop 128.0
        %v828 = vmul.f32 %v820, %v827
        %v829 = vmul.f32 %v822, %v827
        %v830 = vmul.f32 %v824, %v827
        %v831 = vmul.f32 %v826, %v827
        %v832 = vsub.f32 %v809, %v828
        %v833 = vsub.f32 %v810, %v829
        %v834 = vsub.f32 %v811, %v830
        %v835 = vsub.f32 %v812, %v831
        %v836 = vmul.f32 %v832, %v832
        %v837 = vmul.f32 %v833, %v833
        %v838 = vmul.f32 %v834, %v834
        %v839 = vmul.f32 %v835, %v835
        %840 = vadd.xlane.f32.xlu0 %v836
        %v841 = vpop.xlane.xlu0 %840
        %842 = vadd.xlane.f32.xlu0 %v837
        %v843 = vpop.xlane.xlu0 %842
        %844 = vadd.xlane.f32.xlu0 %v838
        %v845 = vpop.xlane.xlu0 %844
        %846 = vadd.xlane.f32.xlu0 %v839
        %v847 = vpop.xlane.xlu0 %846
        %v848 = vmul.f32 %v841, %v827
        %v849 = vmul.f32 %v843, %v827
        %v850 = vmul.f32 %v845, %v827
        %v851 = vmul.f32 %v847, %v827
        %v852 = vadd.f32 %v848, 1e-05
        %v853 = vadd.f32 %v849, 1e-05
        %v854 = vadd.f32 %v850, 1e-05
        %v855 = vadd.f32 %v851, 1e-05
        %v856 = vrsqrt.pop %v852
        %v857 = vrsqrt.pop %v853
        %v858 = vrsqrt.pop %v854
        %v859 = vrsqrt.pop %v855
        %v860 = vmul.f32 %v832, %v856
        %v861 = vmul.f32 %v833, %v857
        %v862 = vmul.f32 %v834, %v858
        %v863 = vmul.f32 %v835, %v859
        %v865 = vlaneseq
        %v866 = vshrl.u32 %v865, 7
        %v867 = vsub.s32 0, %v866
        %v868 = vrot.slane %v817, %v867
        %v870 = vmul.f32 %v860, %v868
        %v871 = vmul.f32 %v861, %v868
        %v872 = vmul.f32 %v862, %v868
        %v873 = vmul.f32 %v863, %v868
        %v875 = vlaneseq
        %v876 = vshrl.u32 %v875, 7
        %v877 = vsub.s32 0, %v876
        %v878 = vrot.slane %v818, %v877
        %v880 = vadd.f32 %v870, %v878
        %v881 = vadd.f32 %v871, %v878
        %v882 = vadd.f32 %v872, %v878
        %v883 = vadd.f32 %v873, %v878
        %v884 = vmax.f32 %v880, 0.0
        %v885 = vmax.f32 %v881, 0.0
        %v886 = vmax.f32 %v882, 0.0
        %v887 = vmax.f32 %v883, 0.0
        %v888 = vld [vmem:[%s6] sm:$0xff]
        %v889 = vld [vmem:[%s6 + $0x8] sm:$0xff]
        %v890 = vld [vmem:[%s6 + $0x10] sm:$0xff]
        %v891 = vld [vmem:[%s6 + $0x18] sm:$0xff]
        %v892 = vld [vmem:[%s6 + $0x20] sm:$0xff]
        %v893 = vld [vmem:[%s6 + $0x28] sm:$0xff]
        %v894 = vld [vmem:[%s6 + $0x30] sm:$0xff]
        %v895 = vld [vmem:[%s6 + $0x38] sm:$0xff]
        %v896 = vld [vmem:[%s6 + $0x40] sm:$0xff]
        %v897 = vld [vmem:[%s6 + $0x48] sm:$0xff]
        %v898 = vld [vmem:[%s6 + $0x50] sm:$0xff]
        %v899 = vld [vmem:[%s6 + $0x58] sm:$0xff]
        %v900 = vld [vmem:[%s6 + $0x60] sm:$0xff]
        %v901 = vld [vmem:[%s6 + $0x68] sm:$0xff]
        %v902 = vld [vmem:[%s6 + $0x70] sm:$0xff]
        %v903 = vld [vmem:[%s6 + $0x78] sm:$0xff]
        %v904 = vld [vmem:[#allocation8] sm:$0x1]
        %v906 = vlaneseq
        %v907 = vshrl.u32 %v906, 7
        %v908 = vsub.s32 0, %v907
        %v909 = vrot.slane %v904, %v908
        %911 = vmatprep.subr.mxu0 0.0
        %912 = vmatpush1.msra.mxu0 %v888
        %913 = vmatprep.subr.mxu0 0.0
        %914 = vmatpush1.msra.mxu0 %v889
        %915 = vmatprep.subr.mxu0 0.0
        %916 = vmatpush1.msra.mxu0 %v890
        %917 = vmatprep.subr.mxu0 0.0
        %918 = vmatpush1.msra.mxu0 %v891
        %919 = vmatprep.subr.mxu0 0.0
        %920 = vmatpush1.msra.mxu0 %v892
        %921 = vmatprep.subr.mxu0 0.0
        %922 = vmatpush1.msra.mxu0 %v893
        %923 = vmatprep.subr.mxu0 0.0
        %924 = vmatpush1.msra.mxu0 %v894
        %925 = vmatprep.subr.mxu0 0.0
        %926 = vmatpush1.msra.mxu0 %v895
        %927 = vmatprep.subr.mxu0 0.0
        %928 = vmatpush1.msra.mxu0 %v896
        %929 = vmatprep.subr.mxu0 0.0
        %930 = vmatpush1.msra.mxu0 %v897
        %931 = vmatprep.subr.mxu0 0.0
        %932 = vmatpush1.msra.mxu0 %v898
        %933 = vmatprep.subr.mxu0 0.0
        %934 = vmatpush1.msra.mxu0 %v899
        %935 = vmatprep.subr.mxu0 0.0
        %936 = vmatpush1.msra.mxu0 %v900
        %937 = vmatprep.subr.mxu0 0.0
        %938 = vmatpush1.msra.mxu0 %v901
        %939 = vmatprep.subr.mxu0 0.0
        %940 = vmatpush1.msra.mxu0 %v902
        %941 = vmatprep.subr.mxu0 0.0
        %942 = vmatpush1.msra.mxu0 %v903
        %943 = vmatprep.subr.mxu0 0.0
        %944 = vmatpush1.msra.mxu0 0.0
        %945 = vmatprep.subr.mxu0 0.0
        %946 = vmatpush1.msra.mxu0 0.0
        %947 = vmatprep.subr.mxu0 0.0
        %948 = vmatpush1.msra.mxu0 0.0
        %949 = vmatprep.subr.mxu0 0.0
        %950 = vmatpush1.msra.mxu0 0.0
        %951 = vmatprep.subr.mxu0 0.0
        %952 = vmatpush1.msra.mxu0 0.0
        %953 = vmatprep.subr.mxu0 0.0
        %954 = vmatpush1.msra.mxu0 0.0
        %955 = vmatprep.subr.mxu0 0.0
        %956 = vmatpush1.msra.mxu0 0.0
        %957 = vmatprep.subr.mxu0 0.0
        %958 = vmatpush1.msra.mxu0 0.0
        %959 = vmatprep.subr.mxu0 0.0
        %960 = vmatpush1.msra.mxu0 0.0
        %961 = vmatprep.subr.mxu0 0.0
        %962 = vmatpush1.msra.mxu0 0.0
        %963 = vmatprep.subr.mxu0 0.0
        %964 = vmatpush1.msra.mxu0 0.0
        %965 = vmatprep.subr.mxu0 0.0
        %966 = vmatpush1.msra.mxu0 0.0
        %967 = vmatprep.subr.mxu0 0.0
        %968 = vmatpush1.msra.mxu0 0.0
        %969 = vmatprep.subr.mxu0 0.0
        %970 = vmatpush1.msra.mxu0 0.0
        %971 = vmatprep.subr.mxu0 0.0
        %972 = vmatpush1.msra.mxu0 0.0
        %973 = vmatprep.subr.mxu0 0.0
        %974 = vmatpush1.msra.mxu0 0.0
        %975 = vmatprep.mubr.f32.mxu0 0.0
        %976 = vmatmul.mubr.f32.gmra.mrb[0].mxu0 %v884
        %v977 = vpop.f32.mrb[0].mxu0
        %v978 = vadd.f32 %v909, %v977
        %v979 = vpop.f32.mrb[0].mxu0
        %980 = vmatprep.mubr.f32.mxu0 0.0
        %981 = vmatmul.mubr.f32.gmra.mrb[0].mxu0 %v885
        %v982 = vpop.f32.mrb[0].mxu0
        %v983 = vadd.f32 %v909, %v982
        %v984 = vpop.f32.mrb[0].mxu0
        %985 = vmatprep.mubr.f32.mxu0 0.0
        %986 = vmatmul.mubr.f32.gmra.mrb[0].mxu0 %v886
        %v987 = vpop.f32.mrb[0].mxu0
        %v988 = vadd.f32 %v909, %v987
        %v989 = vpop.f32.mrb[0].mxu0
        %990 = vmatprep.mubr.f32.mxu0 0.0
        %991 = vmatmul.mubr.f32.gmra.mrb[0].mxu0 %v887
        %v992 = vpop.f32.mrb[0].mxu0
        %v993 = vadd.f32 %v909, %v992
        %v994 = vpop.f32.mrb[0].mxu0
        %995 = vdwg.mxu0
        %v996 = vld [vmem:[#allocation9] sm:$0x1]
        %v997 = vld [vmem:[#allocation11] sm:$0x1]
        %vm998 = vcmask 523264
        %v999 = vsel %vm998, %v978, 0.0
        %1000 = vadd.xlane.f32.xlu0 %v999
        %v1001 = vpop.xlane.xlu0 %1000
        %v1002 = vsel %vm998, %v983, 0.0
        %1003 = vadd.xlane.f32.xlu0 %v1002
        %v1004 = vpop.xlane.xlu0 %1003
        %v1005 = vsel %vm998, %v988, 0.0
        %1006 = vadd.xlane.f32.xlu0 %v1005
        %v1007 = vpop.xlane.xlu0 %1006
        %v1008 = vsel %vm998, %v993, 0.0
        %1009 = vadd.xlane.f32.xlu0 %v1008
        %v1010 = vpop.xlane.xlu0 %1009
        %v1011 = vrcp.pop 64.0
        %v1012 = vmul.f32 %v1001, %v1011
        %v1013 = vmul.f32 %v1004, %v1011
        %v1014 = vmul.f32 %v1007, %v1011
        %v1015 = vmul.f32 %v1010, %v1011
        %v1016 = vsub.f32 %v978, %v1012
        %v1017 = vsub.f32 %v983, %v1013
        %v1018 = vsub.f32 %v988, %v1014
        %v1019 = vsub.f32 %v993, %v1015
        %v1020 = vmul.f32 %v1016, %v1016
        %v1021 = vmul.f32 %v1017, %v1017
        %v1022 = vmul.f32 %v1018, %v1018
        %v1023 = vmul.f32 %v1019, %v1019
        %v1024 = vsel %vm998, %v1020, 0.0
        %1025 = vadd.xlane.f32.xlu0 %v1024
        %v1026 = vpop.xlane.xlu0 %1025
        %v1027 = vsel %vm998, %v1021, 0.0
        %1028 = vadd.xlane.f32.xlu0 %v1027
        %v1029 = vpop.xlane.xlu0 %1028
        %v1030 = vsel %vm998, %v1022, 0.0
        %1031 = vadd.xlane.f32.xlu0 %v1030
        %v1032 = vpop.xlane.xlu0 %1031
        %v1033 = vsel %vm998, %v1023, 0.0
        %1034 = vadd.xlane.f32.xlu0 %v1033
        %v1035 = vpop.xlane.xlu0 %1034
        %v1036 = vmul.f32 %v1026, %v1011
        %v1037 = vmul.f32 %v1029, %v1011
        %v1038 = vmul.f32 %v1032, %v1011
        %v1039 = vmul.f32 %v1035, %v1011
        %v1040 = vadd.f32 %v1036, 1e-05
        %v1041 = vadd.f32 %v1037, 1e-05
        %v1042 = vadd.f32 %v1038, 1e-05
        %v1043 = vadd.f32 %v1039, 1e-05
        %v1044 = vrsqrt.pop %v1040
        %v1045 = vrsqrt.pop %v1041
        %v1046 = vrsqrt.pop %v1042
        %v1047 = vrsqrt.pop %v1043
        %v1048 = vmul.f32 %v1016, %v1044
        %v1049 = vmul.f32 %v1017, %v1045
        %v1050 = vmul.f32 %v1018, %v1046
        %v1051 = vmul.f32 %v1019, %v1047
        %v1053 = vlaneseq
        %v1054 = vshrl.u32 %v1053, 7
        %v1055 = vsub.s32 0, %v1054
        %v1056 = vrot.slane %v996, %v1055
        %v1058 = vmul.f32 %v1048, %v1056
        %v1059 = vmul.f32 %v1049, %v1056
        %v1060 = vmul.f32 %v1050, %v1056
        %v1061 = vmul.f32 %v1051, %v1056
        %v1063 = vlaneseq
        %v1064 = vshrl.u32 %v1063, 7
        %v1065 = vsub.s32 0, %v1064
        %v1066 = vrot.slane %v997, %v1065
        %v1068 = vadd.f32 %v1058, %v1066
        %v1069 = vadd.f32 %v1059, %v1066
        %v1070 = vadd.f32 %v1060, %v1066
        %v1071 = vadd.f32 %v1061, %v1066
        %v1072 = vmax.f32 %v1068, 0.0
        %v1073 = vmax.f32 %v1069, 0.0
        %v1074 = vmax.f32 %v1070, 0.0
        %v1075 = vmax.f32 %v1071, 0.0
        %1077 = vset.pattern.permute.xlu0 0
        %1078 = vperm.xlu0 %1077, %v813
        %v1079 = vpop.permute.xlu0 %1078
        %1082 = vset.pattern.permute.xlu0 0
        %1083 = vperm.xlu0 %1082, %v814
        %v1084 = vpop.permute.xlu0 %1083
        %1087 = vset.pattern.permute.xlu0 0
        %1088 = vperm.xlu0 %1087, %v815
        %v1089 = vpop.permute.xlu0 %1088
        %1092 = vset.pattern.permute.xlu0 0
        %1093 = vperm.xlu0 %1092, %v816
        %v1094 = vpop.permute.xlu0 %1093
        %v1096 = vmul.f32 %v1072, %v1079
        %v1097 = vmul.f32 %v1073, %v1084
        %v1098 = vmul.f32 %v1074, %v1089
        %v1099 = vmul.f32 %v1075, %v1094
        %1100 = vst.msk [vmem:[#allocation2] sm:$0xff] %vm998, %v1096
        %1101 = vst.msk [vmem:[#allocation2 + $0x8] sm:$0xff] %vm998, %v1097
        %1102 = vst.msk [vmem:[#allocation2 + $0x10] sm:$0xff] %vm998, %v1098
        %1103 = vst.msk [vmem:[#allocation2 + $0x18] sm:$0xff] %vm998, %v1099
        %v1104 = vld [vmem:[%s645] sm:$0xff]
        %v1105 = vld [vmem:[%s805] sm:$0xff]
        %v1106 = vld [vmem:[%s4] sm:$0x1]
        %v1107 = vld [vmem:[#allocation6] sm:$0x1]
        %1108 = vadd.xlane.f32.xlu0 %v1104
        %v1109 = vpop.xlane.xlu0 %1108
        %v1110 = vmul.f32 %v1109, %v827
        %v1111 = vsub.f32 %v1104, %v1110
        %v1112 = vmul.f32 %v1111, %v1111
        %1113 = vadd.xlane.f32.xlu0 %v1112
        %v1114 = vpop.xlane.xlu0 %1113
        %v1115 = vmul.f32 %v1114, %v827
        %v1116 = vadd.f32 %v1115, 1e-05
        %v1117 = vrsqrt.pop %v1116
        %v1118 = vmul.f32 %v1111, %v1117
        %v1120 = vlaneseq
        %v1121 = vshrl.u32 %v1120, 7
        %v1122 = vsub.s32 0, %v1121
        %v1123 = vrot.slane %v1106, %v1122
        %v1125 = vmul.f32 %v1118, %v1123
        %v1127 = vlaneseq
        %v1128 = vshrl.u32 %v1127, 7
        %v1129 = vsub.s32 0, %v1128
        %v1130 = vrot.slane %v1107, %v1129
        %v1132 = vadd.f32 %v1125, %v1130
        %v1133 = vmax.f32 %v1132, 0.0
        %v1134 = vld [vmem:[%s6] sm:$0xff]
        %v1135 = vld [vmem:[%s6 + $0x8] sm:$0xff]
        %v1136 = vld [vmem:[%s6 + $0x10] sm:$0xff]
        %v1137 = vld [vmem:[%s6 + $0x18] sm:$0xff]
        %v1138 = vld [vmem:[%s6 + $0x20] sm:$0xff]
        %v1139 = vld [vmem:[%s6 + $0x28] sm:$0xff]
        %v1140 = vld [vmem:[%s6 + $0x30] sm:$0xff]
        %v1141 = vld [vmem:[%s6 + $0x38] sm:$0xff]
        %v1142 = vld [vmem:[%s6 + $0x40] sm:$0xff]
        %v1143 = vld [vmem:[%s6 + $0x48] sm:$0xff]
        %v1144 = vld [vmem:[%s6 + $0x50] sm:$0xff]
        %v1145 = vld [vmem:[%s6 + $0x58] sm:$0xff]
        %v1146 = vld [vmem:[%s6 + $0x60] sm:$0xff]
        %v1147 = vld [vmem:[%s6 + $0x68] sm:$0xff]
        %v1148 = vld [vmem:[%s6 + $0x70] sm:$0xff]
        %v1149 = vld [vmem:[%s6 + $0x78] sm:$0xff]
        %v1150 = vld [vmem:[#allocation8] sm:$0x1]
        %v1152 = vlaneseq
        %v1153 = vshrl.u32 %v1152, 7
        %v1154 = vsub.s32 0, %v1153
        %v1155 = vrot.slane %v1150, %v1154
        %1157 = vmatprep.subr.mxu0 0.0
        %1158 = vmatpush1.msra.mxu0 %v1134
        %1159 = vmatprep.subr.mxu0 0.0
        %1160 = vmatpush1.msra.mxu0 %v1135
        %1161 = vmatprep.subr.mxu0 0.0
        %1162 = vmatpush1.msra.mxu0 %v1136
        %1163 = vmatprep.subr.mxu0 0.0
        %1164 = vmatpush1.msra.mxu0 %v1137
        %1165 = vmatprep.subr.mxu0 0.0
        %1166 = vmatpush1.msra.mxu0 %v1138
        %1167 = vmatprep.subr.mxu0 0.0
        %1168 = vmatpush1.msra.mxu0 %v1139
        %1169 = vmatprep.subr.mxu0 0.0
        %1170 = vmatpush1.msra.mxu0 %v1140
        %1171 = vmatprep.subr.mxu0 0.0
        %1172 = vmatpush1.msra.mxu0 %v1141
        %1173 = vmatprep.subr.mxu0 0.0
        %1174 = vmatpush1.msra.mxu0 %v1142
        %1175 = vmatprep.subr.mxu0 0.0
        %1176 = vmatpush1.msra.mxu0 %v1143
        %1177 = vmatprep.subr.mxu0 0.0
        %1178 = vmatpush1.msra.mxu0 %v1144
        %1179 = vmatprep.subr.mxu0 0.0
        %1180 = vmatpush1.msra.mxu0 %v1145
        %1181 = vmatprep.subr.mxu0 0.0
        %1182 = vmatpush1.msra.mxu0 %v1146
        %1183 = vmatprep.subr.mxu0 0.0
        %1184 = vmatpush1.msra.mxu0 %v1147
        %1185 = vmatprep.subr.mxu0 0.0
        %1186 = vmatpush1.msra.mxu0 %v1148
        %1187 = vmatprep.subr.mxu0 0.0
        %1188 = vmatpush1.msra.mxu0 %v1149
        %1189 = vmatprep.subr.mxu0 0.0
        %1190 = vmatpush1.msra.mxu0 0.0
        %1191 = vmatprep.subr.mxu0 0.0
        %1192 = vmatpush1.msra.mxu0 0.0
        %1193 = vmatprep.subr.mxu0 0.0
        %1194 = vmatpush1.msra.mxu0 0.0
        %1195 = vmatprep.subr.mxu0 0.0
        %1196 = vmatpush1.msra.mxu0 0.0
        %1197 = vmatprep.subr.mxu0 0.0
        %1198 = vmatpush1.msra.mxu0 0.0
        %1199 = vmatprep.subr.mxu0 0.0
        %1200 = vmatpush1.msra.mxu0 0.0
        %1201 = vmatprep.subr.mxu0 0.0
        %1202 = vmatpush1.msra.mxu0 0.0
        %1203 = vmatprep.subr.mxu0 0.0
        %1204 = vmatpush1.msra.mxu0 0.0
        %1205 = vmatprep.subr.mxu0 0.0
        %1206 = vmatpush1.msra.mxu0 0.0
        %1207 = vmatprep.subr.mxu0 0.0
        %1208 = vmatpush1.msra.mxu0 0.0
        %1209 = vmatprep.subr.mxu0 0.0
        %1210 = vmatpush1.msra.mxu0 0.0
        %1211 = vmatprep.subr.mxu0 0.0
        %1212 = vmatpush1.msra.mxu0 0.0
        %1213 = vmatprep.subr.mxu0 0.0
        %1214 = vmatpush1.msra.mxu0 0.0
        %1215 = vmatprep.subr.mxu0 0.0
        %1216 = vmatpush1.msra.mxu0 0.0
        %1217 = vmatprep.subr.mxu0 0.0
        %1218 = vmatpush1.msra.mxu0 0.0
        %1219 = vmatprep.subr.mxu0 0.0
        %1220 = vmatpush1.msra.mxu0 0.0
        %1221 = vmatprep.mubr.f32.mxu0 0.0
        %1222 = vmatmul.mubr.f32.gmra.mrb[0].mxu0 %v1133
        %v1223 = vpop.f32.mrb[0].mxu0
        %v1224 = vadd.f32 %v1155, %v1223
        %v1225 = vpop.f32.mrb[0].mxu0
        %1226 = vdwg.mxu0
        %v1227 = vld [vmem:[#allocation9] sm:$0x1]
        %v1228 = vld [vmem:[#allocation11] sm:$0x1]
        %v1229 = vsel %vm998, %v1224, 0.0
        %1230 = vadd.xlane.f32.xlu0 %v1229
        %v1231 = vpop.xlane.xlu0 %1230
        %v1232 = vmul.f32 %v1231, %v1011
        %v1233 = vsub.f32 %v1224, %v1232
        %v1234 = vmul.f32 %v1233, %v1233
        %v1235 = vsel %vm998, %v1234, 0.0
        %1236 = vadd.xlane.f32.xlu0 %v1235
        %v1237 = vpop.xlane.xlu0 %1236
        %v1238 = vmul.f32 %v1237, %v1011
        %v1239 = vadd.f32 %v1238, 1e-05
        %v1240 = vrsqrt.pop %v1239
        %v1241 = vmul.f32 %v1233, %v1240
        %v1243 = vlaneseq
        %v1244 = vshrl.u32 %v1243, 7
        %v1245 = vsub.s32 0, %v1244
        %v1246 = vrot.slane %v1227, %v1245
        %v1248 = vmul.f32 %v1241, %v1246
        %v1250 = vlaneseq
        %v1251 = vshrl.u32 %v1250, 7
        %v1252 = vsub.s32 0, %v1251
        %v1253 = vrot.slane %v1228, %v1252
        %v1255 = vadd.f32 %v1248, %v1253
        %v1256 = vmax.f32 %v1255, 0.0
        %1258 = vset.pattern.permute.xlu0 0
        %1259 = vperm.xlu0 %1258, %v1105
        %v1260 = vpop.permute.xlu0 %1259
        %v1262 = vmul.f32 %v1256, %v1260
        %1263 = vst.msk [vmem:[#allocation2 + $0x20] sm:$0xff] %vm998, %v1262
        %v1264 = vld [vmem:[#allocation12] sm:$0x1]
        %v1265 = vld [vmem:[#allocation2] sm:$0xff]
        %v1266 = vld [vmem:[#allocation2 + $0x8] sm:$0xff]
        %v1267 = vld [vmem:[#allocation2 + $0x10] sm:$0xff]
        %v1268 = vld [vmem:[#allocation2 + $0x18] sm:$0xff]
        %v1269 = vld [vmem:[%s10] sm:$0xff]
        %v1270 = vld [vmem:[%s10 + $0x8] sm:$0xff]
        %v1271 = vld [vmem:[%s10 + $0x10] sm:$0xff]
        %v1272 = vld [vmem:[%s10 + $0x18] sm:$0xff]
        %v1273 = vld [vmem:[%s10 + $0x20] sm:$0xff]
        %v1274 = vld [vmem:[%s10 + $0x28] sm:$0xff]
        %v1275 = vld [vmem:[%s10 + $0x30] sm:$0xff]
        %v1276 = vld [vmem:[%s10 + $0x38] sm:$0xff]
        %v1278 = vsel %vm998, %v1265, 0
        %v1281 = vsel %vm998, %v1266, 0
        %v1284 = vsel %vm998, %v1267, 0
        %v1287 = vsel %vm998, %v1268, 0
        %1289 = vmatprep.subr.mxu0 0.0
        %1290 = vmatpush1.msra.mxu0 %v1269
        %1291 = vmatprep.subr.mxu0 0.0
        %1292 = vmatpush1.msra.mxu0 %v1270
        %1293 = vmatprep.subr.mxu0 0.0
        %1294 = vmatpush1.msra.mxu0 %v1271
        %1295 = vmatprep.subr.mxu0 0.0
        %1296 = vmatpush1.msra.mxu0 %v1272
        %1297 = vmatprep.subr.mxu0 0.0
        %1298 = vmatpush1.msra.mxu0 %v1273
        %1299 = vmatprep.subr.mxu0 0.0
        %1300 = vmatpush1.msra.mxu0 %v1274
        %1301 = vmatprep.subr.mxu0 0.0
        %1302 = vmatpush1.msra.mxu0 %v1275
        %1303 = vmatprep.subr.mxu0 0.0
        %1304 = vmatpush1.msra.mxu0 %v1276
        %1305 = vmatprep.subr.mxu0 0.0
        %1306 = vmatpush1.msra.mxu0 0.0
        %1307 = vmatprep.subr.mxu0 0.0
        %1308 = vmatpush1.msra.mxu0 0.0
        %1309 = vmatprep.subr.mxu0 0.0
        %1310 = vmatpush1.msra.mxu0 0.0
        %1311 = vmatprep.subr.mxu0 0.0
        %1312 = vmatpush1.msra.mxu0 0.0
        %1313 = vmatprep.subr.mxu0 0.0
        %1314 = vmatpush1.msra.mxu0 0.0
        %1315 = vmatprep.subr.mxu0 0.0
        %1316 = vmatpush1.msra.mxu0 0.0
        %1317 = vmatprep.subr.mxu0 0.0
        %1318 = vmatpush1.msra.mxu0 0.0
        %1319 = vmatprep.subr.mxu0 0.0
        %1320 = vmatpush1.msra.mxu0 0.0
        %1321 = vmatprep.subr.mxu0 0.0
        %1322 = vmatpush1.msra.mxu0 0.0
        %1323 = vmatprep.subr.mxu0 0.0
        %1324 = vmatpush1.msra.mxu0 0.0
        %1325 = vmatprep.subr.mxu0 0.0
        %1326 = vmatpush1.msra.mxu0 0.0
        %1327 = vmatprep.subr.mxu0 0.0
        %1328 = vmatpush1.msra.mxu0 0.0
        %1329 = vmatprep.subr.mxu0 0.0
        %1330 = vmatpush1.msra.mxu0 0.0
        %1331 = vmatprep.subr.mxu0 0.0
        %1332 = vmatpush1.msra.mxu0 0.0
        %1333 = vmatprep.subr.mxu0 0.0
        %1334 = vmatpush1.msra.mxu0 0.0
        %1335 = vmatprep.subr.mxu0 0.0
        %1336 = vmatpush1.msra.mxu0 0.0
        %1337 = vmatprep.subr.mxu0 0.0
        %1338 = vmatpush1.msra.mxu0 0.0
        %1339 = vmatprep.subr.mxu0 0.0
        %1340 = vmatpush1.msra.mxu0 0.0
        %1341 = vmatprep.subr.mxu0 0.0
        %1342 = vmatpush1.msra.mxu0 0.0
        %1343 = vmatprep.subr.mxu0 0.0
        %1344 = vmatpush1.msra.mxu0 0.0
        %1345 = vmatprep.subr.mxu0 0.0
        %1346 = vmatpush1.msra.mxu0 0.0
        %1347 = vmatprep.subr.mxu0 0.0
        %1348 = vmatpush1.msra.mxu0 0.0
        %1349 = vmatprep.subr.mxu0 0.0
        %1350 = vmatpush1.msra.mxu0 0.0
        %1351 = vmatprep.subr.mxu0 0.0
        %1352 = vmatpush1.msra.mxu0 0.0
        %1353 = vmatprep.mubr.f32.mxu0 0.0
        %1354 = vmatmul.mubr.f32.gmra.mrb[0].mxu0 %v1278
        %v1355 = vpop.f32.mrb[0].mxu0
        %v1356 = vadd.f32 0.0, %v1355
        %v1357 = vpop.f32.mrb[0].mxu0
        %1358 = vmatprep.mubr.f32.mxu0 0.0
        %1359 = vmatmul.mubr.f32.gmra.mrb[0].mxu0 %v1281
        %v1360 = vpop.f32.mrb[0].mxu0
        %v1361 = vadd.f32 0.0, %v1360
        %v1362 = vpop.f32.mrb[0].mxu0
        %1363 = vmatprep.mubr.f32.mxu0 0.0
        %1364 = vmatmul.mubr.f32.gmra.mrb[0].mxu0 %v1284
        %v1365 = vpop.f32.mrb[0].mxu0
        %v1366 = vadd.f32 0.0, %v1365
        %v1367 = vpop.f32.mrb[0].mxu0
        %1368 = vmatprep.mubr.f32.mxu0 0.0
        %1369 = vmatmul.mubr.f32.gmra.mrb[0].mxu0 %v1287
        %v1370 = vpop.f32.mrb[0].mxu0
        %v1371 = vadd.f32 0.0, %v1370
        %v1372 = vpop.f32.mrb[0].mxu0
        %1373 = vdwg.mxu0
        %v1375 = vlaneseq
        %v1376 = vshrl.u32 %v1375, 7
        %v1377 = vsub.s32 0, %v1376
        %v1378 = vrot.slane %v1264, %v1377
        %v1380 = vadd.f32 %v1378, %v1356
        %v1381 = vadd.f32 %v1378, %v1361
        %v1382 = vadd.f32 %v1378, %v1366
        %v1383 = vadd.f32 %v1378, %v1371
        %v1384 = vld [vmem:[#allocation2 + $0x2] sm:$0xff]
        %v1385 = vld [vmem:[#allocation2 + $0xa] sm:$0xff]
        %v1386 = vld [vmem:[#allocation2 + $0x12] sm:$0xff]
        %v1387 = vld [vmem:[#allocation2 + $0x1a] sm:$0xff]
        %s1388 = scalar_lea.vmem %s10, 64
        %v1389 = vld [vmem:[%s1388] sm:$0xff]
        %v1390 = vld [vmem:[%s1388 + $0x8] sm:$0xff]
        %v1391 = vld [vmem:[%s1388 + $0x10] sm:$0xff]
        %v1392 = vld [vmem:[%s1388 + $0x18] sm:$0xff]
        %v1393 = vld [vmem:[%s1388 + $0x20] sm:$0xff]
        %v1394 = vld [vmem:[%s1388 + $0x28] sm:$0xff]
        %v1395 = vld [vmem:[%s1388 + $0x30] sm:$0xff]
        %v1396 = vld [vmem:[%s1388 + $0x38] sm:$0xff]
        %v1398 = vsel %vm998, %v1384, 0
        %v1401 = vsel %vm998, %v1385, 0
        %v1404 = vsel %vm998, %v1386, 0
        %v1407 = vsel %vm998, %v1387, 0
        %1409 = vmatprep.subr.mxu0 0.0
        %1410 = vmatpush1.msra.mxu0 %v1389
        %1411 = vmatprep.subr.mxu0 0.0
        %1412 = vmatpush1.msra.mxu0 %v1390
        %1413 = vmatprep.subr.mxu0 0.0
        %1414 = vmatpush1.msra.mxu0 %v1391
        %1415 = vmatprep.subr.mxu0 0.0
        %1416 = vmatpush1.msra.mxu0 %v1392
        %1417 = vmatprep.subr.mxu0 0.0
        %1418 = vmatpush1.msra.mxu0 %v1393
        %1419 = vmatprep.subr.mxu0 0.0
        %1420 = vmatpush1.msra.mxu0 %v1394
        %1421 = vmatprep.subr.mxu0 0.0
        %1422 = vmatpush1.msra.mxu0 %v1395
        %1423 = vmatprep.subr.mxu0 0.0
        %1424 = vmatpush1.msra.mxu0 %v1396
        %1425 = vmatprep.subr.mxu0 0.0
        %1426 = vmatpush1.msra.mxu0 0.0
        %1427 = vmatprep.subr.mxu0 0.0
        %1428 = vmatpush1.msra.mxu0 0.0
        %1429 = vmatprep.subr.mxu0 0.0
        %1430 = vmatpush1.msra.mxu0 0.0
        %1431 = vmatprep.subr.mxu0 0.0
        %1432 = vmatpush1.msra.mxu0 0.0
        %1433 = vmatprep.subr.mxu0 0.0
        %1434 = vmatpush1.msra.mxu0 0.0
        %1435 = vmatprep.subr.mxu0 0.0
        %1436 = vmatpush1.msra.mxu0 0.0
        %1437 = vmatprep.subr.mxu0 0.0
        %1438 = vmatpush1.msra.mxu0 0.0
        %1439 = vmatprep.subr.mxu0 0.0
        %1440 = vmatpush1.msra.mxu0 0.0
        %1441 = vmatprep.subr.mxu0 0.0
        %1442 = vmatpush1.msra.mxu0 0.0
        %1443 = vmatprep.subr.mxu0 0.0
        %1444 = vmatpush1.msra.mxu0 0.0
        %1445 = vmatprep.subr.mxu0 0.0
        %1446 = vmatpush1.msra.mxu0 0.0
        %1447 = vmatprep.subr.mxu0 0.0
        %1448 = vmatpush1.msra.mxu0 0.0
        %1449 = vmatprep.subr.mxu0 0.0
        %1450 = vmatpush1.msra.mxu0 0.0
        %1451 = vmatprep.subr.mxu0 0.0
        %1452 = vmatpush1.msra.mxu0 0.0
        %1453 = vmatprep.subr.mxu0 0.0
        %1454 = vmatpush1.msra.mxu0 0.0
        %1455 = vmatprep.subr.mxu0 0.0
        %1456 = vmatpush1.msra.mxu0 0.0
        %1457 = vmatprep.subr.mxu0 0.0
        %1458 = vmatpush1.msra.mxu0 0.0
        %1459 = vmatprep.subr.mxu0 0.0
        %1460 = vmatpush1.msra.mxu0 0.0
        %1461 = vmatprep.subr.mxu0 0.0
        %1462 = vmatpush1.msra.mxu0 0.0
        %1463 = vmatprep.subr.mxu0 0.0
        %1464 = vmatpush1.msra.mxu0 0.0
        %1465 = vmatprep.subr.mxu0 0.0
        %1466 = vmatpush1.msra.mxu0 0.0
        %1467 = vmatprep.subr.mxu0 0.0
        %1468 = vmatpush1.msra.mxu0 0.0
        %1469 = vmatprep.subr.mxu0 0.0
        %1470 = vmatpush1.msra.mxu0 0.0
        %1471 = vmatprep.subr.mxu0 0.0
        %1472 = vmatpush1.msra.mxu0 0.0
        %1473 = vmatprep.mubr.f32.mxu0 0.0
        %1474 = vmatmul.mubr.f32.gmra.mrb[0].mxu0 %v1398
        %v1475 = vpop.f32.mrb[0].mxu0
        %v1476 = vadd.f32 0.0, %v1475
        %v1477 = vpop.f32.mrb[0].mxu0
        %1478 = vmatprep.mubr.f32.mxu0 0.0
        %1479 = vmatmul.mubr.f32.gmra.mrb[0].mxu0 %v1401
        %v1480 = vpop.f32.mrb[0].mxu0
        %v1481 = vadd.f32 0.0, %v1480
        %v1482 = vpop.f32.mrb[0].mxu0
        %1483 = vmatprep.mubr.f32.mxu0 0.0
        %1484 = vmatmul.mubr.f32.gmra.mrb[0].mxu0 %v1404
        %v1485 = vpop.f32.mrb[0].mxu0
        %v1486 = vadd.f32 0.0, %v1485
        %v1487 = vpop.f32.mrb[0].mxu0
        %1488 = vmatprep.mubr.f32.mxu0 0.0
        %1489 = vmatmul.mubr.f32.gmra.mrb[0].mxu0 %v1407
        %v1490 = vpop.f32.mrb[0].mxu0
        %v1491 = vadd.f32 0.0, %v1490
        %v1492 = vpop.f32.mrb[0].mxu0
        %1493 = vdwg.mxu0
        %v1494 = vadd.f32 %v1380, %v1476
        %v1495 = vadd.f32 %v1381, %v1481
        %v1496 = vadd.f32 %v1382, %v1486
        %v1497 = vadd.f32 %v1383, %v1491
        %v1498 = vld [vmem:[#allocation2 + $0x4] sm:$0xff]
        %v1499 = vld [vmem:[#allocation2 + $0xc] sm:$0xff]
        %v1500 = vld [vmem:[#allocation2 + $0x14] sm:$0xff]
        %v1501 = vld [vmem:[#allocation2 + $0x1c] sm:$0xff]
        %s1502 = scalar_lea.vmem %s10, 128
        %v1503 = vld [vmem:[%s1502] sm:$0xff]
        %v1504 = vld [vmem:[%s1502 + $0x8] sm:$0xff]
        %v1505 = vld [vmem:[%s1502 + $0x10] sm:$0xff]
        %v1506 = vld [vmem:[%s1502 + $0x18] sm:$0xff]
        %v1507 = vld [vmem:[%s1502 + $0x20] sm:$0xff]
        %v1508 = vld [vmem:[%s1502 + $0x28] sm:$0xff]
        %v1509 = vld [vmem:[%s1502 + $0x30] sm:$0xff]
        %v1510 = vld [vmem:[%s1502 + $0x38] sm:$0xff]
        %v1512 = vsel %vm998, %v1498, 0
        %v1515 = vsel %vm998, %v1499, 0
        %v1518 = vsel %vm998, %v1500, 0
        %v1521 = vsel %vm998, %v1501, 0
        %1523 = vmatprep.subr.mxu0 0.0
        %1524 = vmatpush1.msra.mxu0 %v1503
        %1525 = vmatprep.subr.mxu0 0.0
        %1526 = vmatpush1.msra.mxu0 %v1504
        %1527 = vmatprep.subr.mxu0 0.0
        %1528 = vmatpush1.msra.mxu0 %v1505
        %1529 = vmatprep.subr.mxu0 0.0
        %1530 = vmatpush1.msra.mxu0 %v1506
        %1531 = vmatprep.subr.mxu0 0.0
        %1532 = vmatpush1.msra.mxu0 %v1507
        %1533 = vmatprep.subr.mxu0 0.0
        %1534 = vmatpush1.msra.mxu0 %v1508
        %1535 = vmatprep.subr.mxu0 0.0
        %1536 = vmatpush1.msra.mxu0 %v1509
        %1537 = vmatprep.subr.mxu0 0.0
        %1538 = vmatpush1.msra.mxu0 %v1510
        %1539 = vmatprep.subr.mxu0 0.0
        %1540 = vmatpush1.msra.mxu0 0.0
        %1541 = vmatprep.subr.mxu0 0.0
        %1542 = vmatpush1.msra.mxu0 0.0
        %1543 = vmatprep.subr.mxu0 0.0
        %1544 = vmatpush1.msra.mxu0 0.0
        %1545 = vmatprep.subr.mxu0 0.0
        %1546 = vmatpush1.msra.mxu0 0.0
        %1547 = vmatprep.subr.mxu0 0.0
        %1548 = vmatpush1.msra.mxu0 0.0
        %1549 = vmatprep.subr.mxu0 0.0
        %1550 = vmatpush1.msra.mxu0 0.0
        %1551 = vmatprep.subr.mxu0 0.0
        %1552 = vmatpush1.msra.mxu0 0.0
        %1553 = vmatprep.subr.mxu0 0.0
        %1554 = vmatpush1.msra.mxu0 0.0
        %1555 = vmatprep.subr.mxu0 0.0
        %1556 = vmatpush1.msra.mxu0 0.0
        %1557 = vmatprep.subr.mxu0 0.0
        %1558 = vmatpush1.msra.mxu0 0.0
        %1559 = vmatprep.subr.mxu0 0.0
        %1560 = vmatpush1.msra.mxu0 0.0
        %1561 = vmatprep.subr.mxu0 0.0
        %1562 = vmatpush1.msra.mxu0 0.0
        %1563 = vmatprep.subr.mxu0 0.0
        %1564 = vmatpush1.msra.mxu0 0.0
        %1565 = vmatprep.subr.mxu0 0.0
        %1566 = vmatpush1.msra.mxu0 0.0
        %1567 = vmatprep.subr.mxu0 0.0
        %1568 = vmatpush1.msra.mxu0 0.0
        %1569 = vmatprep.subr.mxu0 0.0
        %1570 = vmatpush1.msra.mxu0 0.0
        %1571 = vmatprep.subr.mxu0 0.0
        %1572 = vmatpush1.msra.mxu0 0.0
        %1573 = vmatprep.subr.mxu0 0.0
        %1574 = vmatpush1.msra.mxu0 0.0
        %1575 = vmatprep.subr.mxu0 0.0
        %1576 = vmatpush1.msra.mxu0 0.0
        %1577 = vmatprep.subr.mxu0 0.0
        %1578 = vmatpush1.msra.mxu0 0.0
        %1579 = vmatprep.subr.mxu0 0.0
        %1580 = vmatpush1.msra.mxu0 0.0
        %1581 = vmatprep.subr.mxu0 0.0
        %1582 = vmatpush1.msra.mxu0 0.0
        %1583 = vmatprep.subr.mxu0 0.0
        %1584 = vmatpush1.msra.mxu0 0.0
        %1585 = vmatprep.subr.mxu0 0.0
        %1586 = vmatpush1.msra.mxu0 0.0
        %1587 = vmatprep.mubr.f32.mxu0 0.0
        %1588 = vmatmul.mubr.f32.gmra.mrb[0].mxu0 %v1512
        %v1589 = vpop.f32.mrb[0].mxu0
        %v1590 = vadd.f32 0.0, %v1589
        %v1591 = vpop.f32.mrb[0].mxu0
        %1592 = vmatprep.mubr.f32.mxu0 0.0
        %1593 = vmatmul.mubr.f32.gmra.mrb[0].mxu0 %v1515
        %v1594 = vpop.f32.mrb[0].mxu0
        %v1595 = vadd.f32 0.0, %v1594
        %v1596 = vpop.f32.mrb[0].mxu0
        %1597 = vmatprep.mubr.f32.mxu0 0.0
        %1598 = vmatmul.mubr.f32.gmra.mrb[0].mxu0 %v1518
        %v1599 = vpop.f32.mrb[0].mxu0
        %v1600 = vadd.f32 0.0, %v1599
        %v1601 = vpop.f32.mrb[0].mxu0
        %1602 = vmatprep.mubr.f32.mxu0 0.0
        %1603 = vmatmul.mubr.f32.gmra.mrb[0].mxu0 %v1521
        %v1604 = vpop.f32.mrb[0].mxu0
        %v1605 = vadd.f32 0.0, %v1604
        %v1606 = vpop.f32.mrb[0].mxu0
        %1607 = vdwg.mxu0
        %v1608 = vadd.f32 %v1494, %v1590
        %v1609 = vadd.f32 %v1495, %v1595
        %v1610 = vadd.f32 %v1496, %v1600
        %v1611 = vadd.f32 %v1497, %v1605
        %v1612 = vld [vmem:[#allocation2 + $0x6] sm:$0xff]
        %v1613 = vld [vmem:[#allocation2 + $0xe] sm:$0xff]
        %v1614 = vld [vmem:[#allocation2 + $0x16] sm:$0xff]
        %v1615 = vld [vmem:[#allocation2 + $0x1e] sm:$0xff]
        %s1616 = scalar_lea.vmem %s10, 192
        %v1617 = vld [vmem:[%s1616] sm:$0xff]
        %v1618 = vld [vmem:[%s1616 + $0x8] sm:$0xff]
        %v1619 = vld [vmem:[%s1616 + $0x10] sm:$0xff]
        %v1620 = vld [vmem:[%s1616 + $0x18] sm:$0xff]
        %v1621 = vld [vmem:[%s1616 + $0x20] sm:$0xff]
        %v1622 = vld [vmem:[%s1616 + $0x28] sm:$0xff]
        %v1623 = vld [vmem:[%s1616 + $0x30] sm:$0xff]
        %v1624 = vld [vmem:[%s1616 + $0x38] sm:$0xff]
        %v1626 = vsel %vm998, %v1612, 0
        %v1629 = vsel %vm998, %v1613, 0
        %v1632 = vsel %vm998, %v1614, 0
        %v1635 = vsel %vm998, %v1615, 0
        %1637 = vmatprep.subr.mxu0 0.0
        %1638 = vmatpush1.msra.mxu0 %v1617
        %1639 = vmatprep.subr.mxu0 0.0
        %1640 = vmatpush1.msra.mxu0 %v1618
        %1641 = vmatprep.subr.mxu0 0.0
        %1642 = vmatpush1.msra.mxu0 %v1619
        %1643 = vmatprep.subr.mxu0 0.0
        %1644 = vmatpush1.msra.mxu0 %v1620
        %1645 = vmatprep.subr.mxu0 0.0
        %1646 = vmatpush1.msra.mxu0 %v1621
        %1647 = vmatprep.subr.mxu0 0.0
        %1648 = vmatpush1.msra.mxu0 %v1622
        %1649 = vmatprep.subr.mxu0 0.0
        %1650 = vmatpush1.msra.mxu0 %v1623
        %1651 = vmatprep.subr.mxu0 0.0
        %1652 = vmatpush1.msra.mxu0 %v1624
        %1653 = vmatprep.subr.mxu0 0.0
        %1654 = vmatpush1.msra.mxu0 0.0
        %1655 = vmatprep.subr.mxu0 0.0
        %1656 = vmatpush1.msra.mxu0 0.0
        %1657 = vmatprep.subr.mxu0 0.0
        %1658 = vmatpush1.msra.mxu0 0.0
        %1659 = vmatprep.subr.mxu0 0.0
        %1660 = vmatpush1.msra.mxu0 0.0
        %1661 = vmatprep.subr.mxu0 0.0
        %1662 = vmatpush1.msra.mxu0 0.0
        %1663 = vmatprep.subr.mxu0 0.0
        %1664 = vmatpush1.msra.mxu0 0.0
        %1665 = vmatprep.subr.mxu0 0.0
        %1666 = vmatpush1.msra.mxu0 0.0
        %1667 = vmatprep.subr.mxu0 0.0
        %1668 = vmatpush1.msra.mxu0 0.0
        %1669 = vmatprep.subr.mxu0 0.0
        %1670 = vmatpush1.msra.mxu0 0.0
        %1671 = vmatprep.subr.mxu0 0.0
        %1672 = vmatpush1.msra.mxu0 0.0
        %1673 = vmatprep.subr.mxu0 0.0
        %1674 = vmatpush1.msra.mxu0 0.0
        %1675 = vmatprep.subr.mxu0 0.0
        %1676 = vmatpush1.msra.mxu0 0.0
        %1677 = vmatprep.subr.mxu0 0.0
        %1678 = vmatpush1.msra.mxu0 0.0
        %1679 = vmatprep.subr.mxu0 0.0
        %1680 = vmatpush1.msra.mxu0 0.0
        %1681 = vmatprep.subr.mxu0 0.0
        %1682 = vmatpush1.msra.mxu0 0.0
        %1683 = vmatprep.subr.mxu0 0.0
        %1684 = vmatpush1.msra.mxu0 0.0
        %1685 = vmatprep.subr.mxu0 0.0
        %1686 = vmatpush1.msra.mxu0 0.0
        %1687 = vmatprep.subr.mxu0 0.0
        %1688 = vmatpush1.msra.mxu0 0.0
        %1689 = vmatprep.subr.mxu0 0.0
        %1690 = vmatpush1.msra.mxu0 0.0
        %1691 = vmatprep.subr.mxu0 0.0
        %1692 = vmatpush1.msra.mxu0 0.0
        %1693 = vmatprep.subr.mxu0 0.0
        %1694 = vmatpush1.msra.mxu0 0.0
        %1695 = vmatprep.subr.mxu0 0.0
        %1696 = vmatpush1.msra.mxu0 0.0
        %1697 = vmatprep.subr.mxu0 0.0
        %1698 = vmatpush1.msra.mxu0 0.0
        %1699 = vmatprep.subr.mxu0 0.0
        %1700 = vmatpush1.msra.mxu0 0.0
        %1701 = vmatprep.mubr.f32.mxu0 0.0
        %1702 = vmatmul.mubr.f32.gmra.mrb[0].mxu0 %v1626
        %v1703 = vpop.f32.mrb[0].mxu0
        %v1704 = vadd.f32 0.0, %v1703
        %v1705 = vpop.f32.mrb[0].mxu0
        %1706 = vmatprep.mubr.f32.mxu0 0.0
        %1707 = vmatmul.mubr.f32.gmra.mrb[0].mxu0 %v1629
        %v1708 = vpop.f32.mrb[0].mxu0
        %v1709 = vadd.f32 0.0, %v1708
        %v1710 = vpop.f32.mrb[0].mxu0
        %1711 = vmatprep.mubr.f32.mxu0 0.0
        %1712 = vmatmul.mubr.f32.gmra.mrb[0].mxu0 %v1632
        %v1713 = vpop.f32.mrb[0].mxu0
        %v1714 = vadd.f32 0.0, %v1713
        %v1715 = vpop.f32.mrb[0].mxu0
        %1716 = vmatprep.mubr.f32.mxu0 0.0
        %1717 = vmatmul.mubr.f32.gmra.mrb[0].mxu0 %v1635
        %v1718 = vpop.f32.mrb[0].mxu0
        %v1719 = vadd.f32 0.0, %v1718
        %v1720 = vpop.f32.mrb[0].mxu0
        %1721 = vdwg.mxu0
        %v1722 = vadd.f32 %v1608, %v1704
        %v1723 = vadd.f32 %v1609, %v1709
        %v1724 = vadd.f32 %v1610, %v1714
        %v1725 = vadd.f32 %v1611, %v1719
        %v1726 = vld [vmem:[#allocation2 + $0x8] sm:$0xff]
        %v1727 = vld [vmem:[#allocation2 + $0x10] sm:$0xff]
        %v1728 = vld [vmem:[#allocation2 + $0x18] sm:$0xff]
        %v1729 = vld [vmem:[#allocation2 + $0x20] sm:$0xff]
        %s1730 = scalar_lea.vmem %s10, 256
        %v1731 = vld [vmem:[%s1730] sm:$0xff]
        %v1732 = vld [vmem:[%s1730 + $0x8] sm:$0xff]
        %v1733 = vld [vmem:[%s1730 + $0x10] sm:$0xff]
        %v1734 = vld [vmem:[%s1730 + $0x18] sm:$0xff]
        %v1735 = vld [vmem:[%s1730 + $0x20] sm:$0xff]
        %v1736 = vld [vmem:[%s1730 + $0x28] sm:$0xff]
        %v1737 = vld [vmem:[%s1730 + $0x30] sm:$0xff]
        %v1738 = vld [vmem:[%s1730 + $0x38] sm:$0xff]
        %v1740 = vsel %vm998, %v1726, 0
        %v1743 = vsel %vm998, %v1727, 0
        %v1746 = vsel %vm998, %v1728, 0
        %v1749 = vsel %vm998, %v1729, 0
        %1751 = vmatprep.subr.mxu0 0.0
        %1752 = vmatpush1.msra.mxu0 %v1731
        %1753 = vmatprep.subr.mxu0 0.0
        %1754 = vmatpush1.msra.mxu0 %v1732
        %1755 = vmatprep.subr.mxu0 0.0
        %1756 = vmatpush1.msra.mxu0 %v1733
        %1757 = vmatprep.subr.mxu0 0.0
        %1758 = vmatpush1.msra.mxu0 %v1734
        %1759 = vmatprep.subr.mxu0 0.0
        %1760 = vmatpush1.msra.mxu0 %v1735
        %1761 = vmatprep.subr.mxu0 0.0
        %1762 = vmatpush1.msra.mxu0 %v1736
        %1763 = vmatprep.subr.mxu0 0.0
        %1764 = vmatpush1.msra.mxu0 %v1737
        %1765 = vmatprep.subr.mxu0 0.0
        %1766 = vmatpush1.msra.mxu0 %v1738
        %1767 = vmatprep.subr.mxu0 0.0
        %1768 = vmatpush1.msra.mxu0 0.0
        %1769 = vmatprep.subr.mxu0 0.0
        %1770 = vmatpush1.msra.mxu0 0.0
        %1771 = vmatprep.subr.mxu0 0.0
        %1772 = vmatpush1.msra.mxu0 0.0
        %1773 = vmatprep.subr.mxu0 0.0
        %1774 = vmatpush1.msra.mxu0 0.0
        %1775 = vmatprep.subr.mxu0 0.0
        %1776 = vmatpush1.msra.mxu0 0.0
        %1777 = vmatprep.subr.mxu0 0.0
        %1778 = vmatpush1.msra.mxu0 0.0
        %1779 = vmatprep.subr.mxu0 0.0
        %1780 = vmatpush1.msra.mxu0 0.0
        %1781 = vmatprep.subr.mxu0 0.0
        %1782 = vmatpush1.msra.mxu0 0.0
        %1783 = vmatprep.subr.mxu0 0.0
        %1784 = vmatpush1.msra.mxu0 0.0
        %1785 = vmatprep.subr.mxu0 0.0
        %1786 = vmatpush1.msra.mxu0 0.0
        %1787 = vmatprep.subr.mxu0 0.0
        %1788 = vmatpush1.msra.mxu0 0.0
        %1789 = vmatprep.subr.mxu0 0.0
        %1790 = vmatpush1.msra.mxu0 0.0
        %1791 = vmatprep.subr.mxu0 0.0
        %1792 = vmatpush1.msra.mxu0 0.0
        %1793 = vmatprep.subr.mxu0 0.0
        %1794 = vmatpush1.msra.mxu0 0.0
        %1795 = vmatprep.subr.mxu0 0.0
        %1796 = vmatpush1.msra.mxu0 0.0
        %1797 = vmatprep.subr.mxu0 0.0
        %1798 = vmatpush1.msra.mxu0 0.0
        %1799 = vmatprep.subr.mxu0 0.0
        %1800 = vmatpush1.msra.mxu0 0.0
        %1801 = vmatprep.subr.mxu0 0.0
        %1802 = vmatpush1.msra.mxu0 0.0
        %1803 = vmatprep.subr.mxu0 0.0
        %1804 = vmatpush1.msra.mxu0 0.0
        %1805 = vmatprep.subr.mxu0 0.0
        %1806 = vmatpush1.msra.mxu0 0.0
        %1807 = vmatprep.subr.mxu0 0.0
        %1808 = vmatpush1.msra.mxu0 0.0
        %1809 = vmatprep.subr.mxu0 0.0
        %1810 = vmatpush1.msra.mxu0 0.0
        %1811 = vmatprep.subr.mxu0 0.0
        %1812 = vmatpush1.msra.mxu0 0.0
        %1813 = vmatprep.subr.mxu0 0.0
        %1814 = vmatpush1.msra.mxu0 0.0
        %1815 = vmatprep.mubr.f32.mxu0 0.0
        %1816 = vmatmul.mubr.f32.gmra.mrb[0].mxu0 %v1740
        %v1817 = vpop.f32.mrb[0].mxu0
        %v1818 = vadd.f32 0.0, %v1817
        %v1819 = vpop.f32.mrb[0].mxu0
        %1820 = vmatprep.mubr.f32.mxu0 0.0
        %1821 = vmatmul.mubr.f32.gmra.mrb[0].mxu0 %v1743
        %v1822 = vpop.f32.mrb[0].mxu0
        %v1823 = vadd.f32 0.0, %v1822
        %v1824 = vpop.f32.mrb[0].mxu0
        %1825 = vmatprep.mubr.f32.mxu0 0.0
        %1826 = vmatmul.mubr.f32.gmra.mrb[0].mxu0 %v1746
        %v1827 = vpop.f32.mrb[0].mxu0
        %v1828 = vadd.f32 0.0, %v1827
        %v1829 = vpop.f32.mrb[0].mxu0
        %1830 = vmatprep.mubr.f32.mxu0 0.0
        %1831 = vmatmul.mubr.f32.gmra.mrb[0].mxu0 %v1749
        %v1832 = vpop.f32.mrb[0].mxu0
        %v1833 = vadd.f32 0.0, %v1832
        %v1834 = vpop.f32.mrb[0].mxu0
        %1835 = vdwg.mxu0
        %v1836 = vadd.f32 %v1722, %v1818
        %v1837 = vadd.f32 %v1723, %v1823
        %v1838 = vadd.f32 %v1724, %v1828
        %v1839 = vadd.f32 %v1725, %v1833
        %v1840 = vld [vmem:[#allocation14] sm:$0x1]
        %v1841 = vld [vmem:[#allocation15] sm:$0x1]
        %v1842 = vsel %vm998, %v1836, 0.0
        %1843 = vadd.xlane.f32.xlu0 %v1842
        %v1844 = vpop.xlane.xlu0 %1843
        %v1845 = vsel %vm998, %v1837, 0.0
        %1846 = vadd.xlane.f32.xlu0 %v1845
        %v1847 = vpop.xlane.xlu0 %1846
        %v1848 = vsel %vm998, %v1838, 0.0
        %1849 = vadd.xlane.f32.xlu0 %v1848
        %v1850 = vpop.xlane.xlu0 %1849
        %v1851 = vsel %vm998, %v1839, 0.0
        %1852 = vadd.xlane.f32.xlu0 %v1851
        %v1853 = vpop.xlane.xlu0 %1852
        %v1854 = vmul.f32 %v1844, %v1011
        %v1855 = vmul.f32 %v1847, %v1011
        %v1856 = vmul.f32 %v1850, %v1011
        %v1857 = vmul.f32 %v1853, %v1011
        %v1858 = vsub.f32 %v1836, %v1854
        %v1859 = vsub.f32 %v1837, %v1855
        %v1860 = vsub.f32 %v1838, %v1856
        %v1861 = vsub.f32 %v1839, %v1857
        %v1862 = vmul.f32 %v1858, %v1858
        %v1863 = vmul.f32 %v1859, %v1859
        %v1864 = vmul.f32 %v1860, %v1860
        %v1865 = vmul.f32 %v1861, %v1861
        %v1866 = vsel %vm998, %v1862, 0.0
        %1867 = vadd.xlane.f32.xlu0 %v1866
        %v1868 = vpop.xlane.xlu0 %1867
        %v1869 = vsel %vm998, %v1863, 0.0
        %1870 = vadd.xlane.f32.xlu0 %v1869
        %v1871 = vpop.xlane.xlu0 %1870
        %v1872 = vsel %vm998, %v1864, 0.0
        %1873 = vadd.xlane.f32.xlu0 %v1872
        %v1874 = vpop.xlane.xlu0 %1873
        %v1875 = vsel %vm998, %v1865, 0.0
        %1876 = vadd.xlane.f32.xlu0 %v1875
        %v1877 = vpop.xlane.xlu0 %1876
        %v1878 = vmul.f32 %v1868, %v1011
        %v1879 = vmul.f32 %v1871, %v1011
        %v1880 = vmul.f32 %v1874, %v1011
        %v1881 = vmul.f32 %v1877, %v1011
        %v1882 = vadd.f32 %v1878, 1e-05
        %v1883 = vadd.f32 %v1879, 1e-05
        %v1884 = vadd.f32 %v1880, 1e-05
        %v1885 = vadd.f32 %v1881, 1e-05
        %v1886 = vrsqrt.pop %v1882
        %v1887 = vrsqrt.pop %v1883
        %v1888 = vrsqrt.pop %v1884
        %v1889 = vrsqrt.pop %v1885
        %v1890 = vmul.f32 %v1858, %v1886
        %v1891 = vmul.f32 %v1859, %v1887
        %v1892 = vmul.f32 %v1860, %v1888
        %v1893 = vmul.f32 %v1861, %v1889
        %v1895 = vlaneseq
        %v1896 = vshrl.u32 %v1895, 7
        %v1897 = vsub.s32 0, %v1896
        %v1898 = vrot.slane %v1840, %v1897
        %v1900 = vmul.f32 %v1890, %v1898
        %v1901 = vmul.f32 %v1891, %v1898
        %v1902 = vmul.f32 %v1892, %v1898
        %v1903 = vmul.f32 %v1893, %v1898
        %v1905 = vlaneseq
        %v1906 = vshrl.u32 %v1905, 7
        %v1907 = vsub.s32 0, %v1906
        %v1908 = vrot.slane %v1841, %v1907
        %v1910 = vadd.f32 %v1900, %v1908
        %v1911 = vadd.f32 %v1901, %v1908
        %v1912 = vadd.f32 %v1902, %v1908
        %v1913 = vadd.f32 %v1903, %v1908
        %v1914 = vmax.f32 %v1910, 0.0
        %v1915 = vmax.f32 %v1911, 0.0
        %v1916 = vmax.f32 %v1912, 0.0
        %v1917 = vmax.f32 %v1913, 0.0
        %v1918 = vld [vmem:[%s14] sm:$0xff]
        %v1919 = vld [vmem:[%s14 + $0x8] sm:$0xff]
        %v1920 = vld [vmem:[%s14 + $0x10] sm:$0xff]
        %v1921 = vld [vmem:[%s14 + $0x18] sm:$0xff]
        %v1922 = vld [vmem:[%s14 + $0x20] sm:$0xff]
        %v1923 = vld [vmem:[%s14 + $0x28] sm:$0xff]
        %v1924 = vld [vmem:[%s14 + $0x30] sm:$0xff]
        %v1925 = vld [vmem:[%s14 + $0x38] sm:$0xff]
        %v1926 = vld [vmem:[%s15] sm:$0x1]
        %v1928 = vlaneseq
        %v1929 = vshrl.u32 %v1928, 7
        %v1930 = vsub.s32 0, %v1929
        %v1931 = vrot.slane %v1926, %v1930
        %v1934 = vsel %vm998, %v1914, 0
        %v1937 = vsel %vm998, %v1915, 0
        %v1940 = vsel %vm998, %v1916, 0
        %v1943 = vsel %vm998, %v1917, 0
        %1945 = vmatprep.subr.mxu0 0.0
        %1946 = vmatpush1.msra.mxu0 %v1918
        %1947 = vmatprep.subr.mxu0 0.0
        %1948 = vmatpush1.msra.mxu0 %v1919
        %1949 = vmatprep.subr.mxu0 0.0
        %1950 = vmatpush1.msra.mxu0 %v1920
        %1951 = vmatprep.subr.mxu0 0.0
        %1952 = vmatpush1.msra.mxu0 %v1921
        %1953 = vmatprep.subr.mxu0 0.0
        %1954 = vmatpush1.msra.mxu0 %v1922
        %1955 = vmatprep.subr.mxu0 0.0
        %1956 = vmatpush1.msra.mxu0 %v1923
        %1957 = vmatprep.subr.mxu0 0.0
        %1958 = vmatpush1.msra.mxu0 %v1924
        %1959 = vmatprep.subr.mxu0 0.0
        %1960 = vmatpush1.msra.mxu0 %v1925
        %1961 = vmatprep.subr.mxu0 0.0
        %1962 = vmatpush1.msra.mxu0 0.0
        %1963 = vmatprep.subr.mxu0 0.0
        %1964 = vmatpush1.msra.mxu0 0.0
        %1965 = vmatprep.subr.mxu0 0.0
        %1966 = vmatpush1.msra.mxu0 0.0
        %1967 = vmatprep.subr.mxu0 0.0
        %1968 = vmatpush1.msra.mxu0 0.0
        %1969 = vmatprep.subr.mxu0 0.0
        %1970 = vmatpush1.msra.mxu0 0.0
        %1971 = vmatprep.subr.mxu0 0.0
        %1972 = vmatpush1.msra.mxu0 0.0
        %1973 = vmatprep.subr.mxu0 0.0
        %1974 = vmatpush1.msra.mxu0 0.0
        %1975 = vmatprep.subr.mxu0 0.0
        %1976 = vmatpush1.msra.mxu0 0.0
        %1977 = vmatprep.subr.mxu0 0.0
        %1978 = vmatpush1.msra.mxu0 0.0
        %1979 = vmatprep.subr.mxu0 0.0
        %1980 = vmatpush1.msra.mxu0 0.0
        %1981 = vmatprep.subr.mxu0 0.0
        %1982 = vmatpush1.msra.mxu0 0.0
        %1983 = vmatprep.subr.mxu0 0.0
        %1984 = vmatpush1.msra.mxu0 0.0
        %1985 = vmatprep.subr.mxu0 0.0
        %1986 = vmatpush1.msra.mxu0 0.0
        %1987 = vmatprep.subr.mxu0 0.0
        %1988 = vmatpush1.msra.mxu0 0.0
        %1989 = vmatprep.subr.mxu0 0.0
        %1990 = vmatpush1.msra.mxu0 0.0
        %1991 = vmatprep.subr.mxu0 0.0
        %1992 = vmatpush1.msra.mxu0 0.0
        %1993 = vmatprep.subr.mxu0 0.0
        %1994 = vmatpush1.msra.mxu0 0.0
        %1995 = vmatprep.subr.mxu0 0.0
        %1996 = vmatpush1.msra.mxu0 0.0
        %1997 = vmatprep.subr.mxu0 0.0
        %1998 = vmatpush1.msra.mxu0 0.0
        %1999 = vmatprep.subr.mxu0 0.0
        %2000 = vmatpush1.msra.mxu0 0.0
        %2001 = vmatprep.subr.mxu0 0.0
        %2002 = vmatpush1.msra.mxu0 0.0
        %2003 = vmatprep.subr.mxu0 0.0
        %2004 = vmatpush1.msra.mxu0 0.0
        %2005 = vmatprep.subr.mxu0 0.0
        %2006 = vmatpush1.msra.mxu0 0.0
        %2007 = vmatprep.subr.mxu0 0.0
        %2008 = vmatpush1.msra.mxu0 0.0
        %2009 = vmatprep.mubr.f32.mxu0 0.0
        %2010 = vmatmul.mubr.f32.gmra.mrb[0].mxu0 %v1934
        %v2011 = vpop.f32.mrb[0].mxu0
        %v2012 = vadd.f32 %v1931, %v2011
        %v2013 = vpop.f32.mrb[0].mxu0
        %2014 = vmatprep.mubr.f32.mxu0 0.0
        %2015 = vmatmul.mubr.f32.gmra.mrb[0].mxu0 %v1937
        %v2016 = vpop.f32.mrb[0].mxu0
        %v2017 = vadd.f32 %v1931, %v2016
        %v2018 = vpop.f32.mrb[0].mxu0
        %2019 = vmatprep.mubr.f32.mxu0 0.0
        %2020 = vmatmul.mubr.f32.gmra.mrb[0].mxu0 %v1940
        %v2021 = vpop.f32.mrb[0].mxu0
        %v2022 = vadd.f32 %v1931, %v2021
        %v2023 = vpop.f32.mrb[0].mxu0
        %2024 = vmatprep.mubr.f32.mxu0 0.0
        %2025 = vmatmul.mubr.f32.gmra.mrb[0].mxu0 %v1943
        %v2026 = vpop.f32.mrb[0].mxu0
        %v2027 = vadd.f32 %v1931, %v2026
        %v2028 = vpop.f32.mrb[0].mxu0
        %2029 = vdwg.mxu0
        %v2030 = vld [vmem:[%s770 + $0x4] sm:$0xff]
        %v2031 = vld [vmem:[%s770 + $0xc] sm:$0xff]
        %v2032 = vld [vmem:[%s770 + $0x14] sm:$0xff]
        %v2033 = vld [vmem:[%s770 + $0x1c] sm:$0xf]
        %v2034 = vld [vmem:[%s645] sm:$0xf]
        %v2036 = vrot.slane %v2034, 4
        %vm2038 = vcmask 1043456
        %v2039 = vsel %vm2038, %v2033, %v2036
        %v2040 = vadd.f32 %v2030, %v2012
        %v2041 = vadd.f32 %v2031, %v2017
        %v2042 = vadd.f32 %v2032, %v2022
        %v2043 = vadd.f32 %v2039, %v2027
        %2044 = vst [vmem:[%s757] sm:$0xff] %v2040
        %2045 = vst [vmem:[%s757 + $0x8] sm:$0xff] %v2041
        %2046 = vst [vmem:[%s757 + $0x10] sm:$0xff] %v2042
        %2047 = vst [vmem:[%s757 + $0x18] sm:$0xff] %v2043
        %s2048 = sand.u32 %s431, 1
        %s2049 = scalar_lea.sflag [#allocation5], %s2048
        %s2050 = sand.u32 %s431, 1
        %s2051 = smul.addr %s2050, 32
        %s2052 = scalar_lea.vmem [#allocation17], %s2051
        // Predicated region
        $region117: #{tpu_custom_call.1} parent=83 // pred_check
          %p2053 = pneg %p441
        $region118: #{tpu_custom_call.1} parent=83 // pred_check_branch
          %2055 = sbr.rel (%p2053) target = $region120
        $region119: #{tpu_custom_call.1} parent=83 // pred_region
          %s2056 = smul.u32 4, %s42
          %s2058 = ssub.s32 512, 512
          %2059 = vsyncadd %s2049, %s2058
          %s2060 = smul.addr %s41, 8
          %s2061 = sadd.s32 %s2056, %s2060
          %s2062 = smul.addr %s2061, 128
          %s2063 = scalar_lea.hbm %s16, %s2062
          %s2064 = sshll.u32 %s2052, 4
          %s2065 = int_to_ptr.vmem [resolvable:$true] %s2064
          %2070 = dma.vmem_to_hbm [thread:$0]  %s2065, 512, %s2063, %s2049, 128, 128, 8
        $region120: #{tpu_custom_call.1} parent=83 // pred_fallthru
          _
      $region84: #{tpu_custom_call.1} parent=5 // pred_fallthru
        _
      %p2071 = scmp.le.s32.totalorder 2, %s32
      // Predicated region
      $region121: #{tpu_custom_call.1} parent=5 // pred_check
        %p2072 = pneg %p2071
      $region122: #{tpu_custom_call.1} parent=5 // pred_check_branch
        %2074 = sbr.rel (%p2072) target = $region124
      $region123: #{tpu_custom_call.1} parent=5 // pred_region
        %s2075 = ssub.s32 %s32, 2
        // Predicated region
        $region125: #{tpu_custom_call.1} parent=123 // pred_check
          %p2076 = pneg %p447
        $region126: #{tpu_custom_call.1} parent=123 // pred_check_branch
          %2078 = sbr.rel (%p2076) target = $region128
        $region127: #{tpu_custom_call.1} parent=123 // pred_region
          %s2079 = sand.u32 %s432, 1
          %s2080 = scalar_lea.sflag [#allocation5], %s2079
          %s2081 = sand.u32 %s432, 1
          %s2082 = smul.addr %s2081, 32
          %s2083 = scalar_lea.vmem [#allocation17], %s2082
          %2084 = dma.done %s2080, 512
        $region128: #{tpu_custom_call.1} parent=123 // pred_fallthru
          _
      $region124: #{tpu_custom_call.1} parent=5 // pred_fallthru
        _
    $region6: #{tpu_custom_call.1} parent=1 // loop_footer
      %s36 = sadd.s32 1, %s32
    $region7: #{tpu_custom_call.1} parent=1 // loop_footer_branch
      %31 = sbr.rel target = $region3
    $region8: #{tpu_custom_call.1} parent=1 // loop_exit
      _
    %2085 = vsyncpa [#allocation4], 1
    %s2086 = scalar_lea.sflag [#allocation4], 1
    %2087 = vsyncpa %s2086, 1
    %2088 = vsyncpa [#allocation7], 1
    %2089 = vsyncpa [#allocation10], 1
    %2090 = vsyncpa [#allocation13], 1
    %2091 = vsyncpa [#allocation16], 1
    %2092 = vsyncpa [#allocation5], 1
    %s2093 = scalar_lea.sflag [#allocation5], 1
    %2094 = vsyncpa %s2093, 1

</llo_original>
